<compile_context>
chip_gen: v7x
topology: tpu7x:2x2x1
jax: 0.10.0
libtpu: 0.0.40
codegen_flags: <defaults>
</compile_context>

<pallas_src>
import functools
import math

import numpy as np
import jax
import jax.numpy as jnp
from jax import lax
from jax.experimental import pallas as pl
from jax.experimental.pallas import tpu as pltpu


# ------------------------------ filter weights ------------------------------ #

def _gaussian_taps_1d(kernel_size, sigma):
    """Normalized 1D Gaussian taps (outer product == module's 2D kernel)."""
    mean = (kernel_size - 1) // 2
    pos = np.arange(kernel_size, dtype=np.float64) - mean
    g = np.exp(-(pos ** 2) / (2.0 * float(sigma) ** 2))
    g = g / g.sum()
    return tuple(float(v) for v in g)


def _gaussian_kernel_2d(kernel_size, sigma):
    """2D kernel computed exactly as in the PyTorch module (for the reference)."""
    pos = np.stack(
        np.meshgrid(np.arange(kernel_size), np.arange(kernel_size), indexing="ij"),
        axis=-1,
    ).astype(np.float64)
    mean = np.array([(kernel_size - 1) // 2] * 2, np.float64)
    std = np.array([sigma, sigma], np.float64)
    k = (1.0 / (2.0 * math.pi * np.prod(std))
         * math.e ** (-(((pos - mean) ** 2) / (std ** 2)).sum(-1) / 2.0))
    k = k / k.sum()
    return k.astype(np.float32)


# ------------------------------- Pallas kernel ------------------------------- #

def _gaussian_blur_kernel(x_ref, o_ref, xp_ref, *, taps, p, H, W):
    """Separable Gaussian blur of a block of images; zero padding done in VMEM.

    x_ref : (Nblk, H, W)        unpadded input images (one pipelined block)
    o_ref : (Nblk, H, W)        blurred output
    xp_ref: (Nblk, H+2p, W+2p)  f32 VMEM scratch (halo zeroed, interior copied)

    `taps` are static Python floats -> vector-scalar multiplies on the VPU,
    no weight DMA.  Taps are symmetric, so shifts are paired: 5 muls/pass for K=9.
    """
    nblk, Hp, Wp = xp_ref.shape

    # ---- in-kernel zero padding: zero only the halo, then copy the interior.
    #      (Halo is re-zeroed every step: scratch is per-core and the cost is
    #       tiny compared to a wrapper-side jnp.pad's full extra HBM pass.)
    if p > 0:
        zrow = jnp.zeros((nblk, p, Wp), jnp.float32)
        xp_ref[:, 0:p, :] = zrow
        xp_ref[:, p + H:Hp, :] = zrow
        zcol = jnp.zeros((nblk, H, p), jnp.float32)
        xp_ref[:, p:p + H, 0:p] = zcol
        xp_ref[:, p:p + H, p + W:Wp] = zcol
    xp_ref[:, p:p + H, p:p + W] = x_ref[...].astype(jnp.float32)

    xp = xp_ref[...]                                        # (Nblk, Hp, Wp) f32

    # ---- horizontal pass (lane axis), symmetric taps paired.
    tmp = taps[p] * xp[:, :, p:p + W]
    for d in range(1, p + 1):
        tmp = tmp + taps[p + d] * (xp[:, :, p - d:p - d + W]
                                   + xp[:, :, p + d:p + d + W])
    # tmp: (Nblk, Hp, W) -- keep every padded row for the vertical pass.

    # ---- vertical pass (sublane axis), symmetric taps paired.
    acc = taps[p] * tmp[:, p:p + H, :]
    for d in range(1, p + 1):
        acc = acc + taps[p + d] * (tmp[:, p - d:p - d + H, :]
                                   + tmp[:, p + d:p + d + H, :])

    o_ref[...] = acc.astype(o_ref.dtype)


# ------------------------------ module wrapper ------------------------------- #

def gaussian_conv2d(x, channels=3, kernel_size=9, sigma=1.0):
    """Forward pass of GaussianConv2d: depthwise blur, padding = kernel_size // 2."""
    B, C, H, W = x.shape
    assert C == channels, "input channel count must match `channels`"
    assert kernel_size % 2 == 1, (
        "kernel_size must be odd: even K with padding=K//2 changes the output "
        "spatial size in the PyTorch module, which this kernel does not model")
    p = kernel_size // 2
    Hp, Wp = H + 2 * p, W + 2 * p
    N = B * C
    taps = _gaussian_taps_1d(kernel_size, sigma)

    xr = x.reshape(N, H, W)

    # Images per grid step, bounded by a conservative per-step VMEM working-set
    # budget (safe for v5e 16 MiB / v6e 32 MiB default scoped and v7x 64 MiB
    # physical VMEM, including double-buffered in/out blocks and live values).
    itemsize = jnp.dtype(x.dtype).itemsize
    per_image = (2 * H * W * itemsize            # input block, double buffered
                 + 2 * H * W * itemsize          # output block, double buffered
                 + Hp * Wp * 4                   # padded f32 scratch
                 + 2 * (Hp * W + H * W) * 4)     # live tmp/acc values + headroom
    budget = 10 * 1024 * 1024
    nblk = int(max(1, min(N, budget // per_image)))
    grid = (pl.cdiv(N, nblk),)

    kernel = functools.partial(_gaussian_blur_kernel, taps=taps, p=p, H=H, W=W)

    out = pl.pallas_call(
        kernel,
        out_shape=jax.ShapeDtypeStruct((N, H, W), x.dtype),
        grid=grid,
        in_specs=[pl.BlockSpec((nblk, H, W), lambda n: (n, 0, 0))],
        out_specs=pl.BlockSpec((nblk, H, W), lambda n: (n, 0, 0)),
        scratch_shapes=[pltpu.VMEM((nblk, Hp, Wp), jnp.float32)],
        compiler_params=pltpu.CompilerParams(
            dimension_semantics=("parallel",),
            vmem_limit_bytes=32 * 1024 * 1024),
    )(xr)
    return out.reshape(B, C, H, W)


# ----------------------------- pure-JAX reference ---------------------------- #

def reference(x, kernel_size=9, sigma=1.0):
    B, C, H, W = x.shape
    p = kernel_size // 2
    k2d = jnp.asarray(_gaussian_kernel_2d(kernel_size, sigma))
    w = jnp.broadcast_to(k2d, (C, 1, kernel_size, kernel_size))
    return lax.conv_general_dilated(
        x, w,
        window_strides=(1, 1),
        padding=[(p, p), (p, p)],
        dimension_numbers=("NCHW", "OIHW", "NCHW"),
        feature_group_count=C,
    )


# ----------------------------------- main ------------------------------------ #

if __name__ == "__main__":
    B, C, H, W = 2, 4, 16, 16            # small deterministic test shape
    kernel_size, sigma = 9, 1.0          # module defaults

    key = jax.random.PRNGKey(0)
    x = jax.random.normal(key, (B, C, H, W), jnp.float32)

    out = gaussian_conv2d(x, channels=C, kernel_size=kernel_size, sigma=sigma)
    out = jax.block_until_ready(out)

    ref = reference(x, kernel_size=kernel_size, sigma=sigma)
    assert out.shape == (B, C, H, W)
    assert jnp.allclose(out, ref, atol=1e-5, rtol=1e-4), "mismatch vs reference"

    print("KERNEL_OK")
</pallas_src>

<mosaic_0001>
module attributes {stable_mosaic.version = 11 : i64} {
  func.func @_gaussian_blur_kernel(%arg0: i32, %arg1: memref<8x16x16xf32, #tpu.memory_space<vmem>>, %arg2: memref<8x16x16xf32, #tpu.memory_space<vmem>>, %arg3: memref<8x24x24xf32, #tpu.memory_space<vmem>>) attributes {dimension_semantics = [#tpu.dimension_semantics<parallel>], iteration_bounds = array<i64: 1>, scalar_prefetch = 0 : i64, scratch_operands = 1 : i64, tpu.core_type = #tpu.core_type<tc>, window_params = [{transform_indices = @transform_0, window_bounds = array<i64: 8, 16, 16>}, {transform_indices = @transform_1, window_bounds = array<i64: 8, 16, 16>}]} {
    %cst = arith.constant 0.000000e+00 : f32
    %0 = vector.broadcast %cst : f32 to vector<8x4x24xf32>
    %c0 = arith.constant 0 : index
    %c0_0 = arith.constant 0 : index
    %c0_1 = arith.constant 0 : index
    %1 = vector.load %arg3[%c0, %c0_0, %c0_1] : memref<8x24x24xf32, #tpu.memory_space<vmem>>, vector<8x4x24xf32>
    tpu.vector_store %arg3[%c0, %c0_0, %c0_1], %0 {strides = array<i32>} : memref<8x24x24xf32, #tpu.memory_space<vmem>>, vector<8x4x24xf32>,
    %c0_2 = arith.constant 0 : index
    %c20 = arith.constant 20 : index
    %c0_3 = arith.constant 0 : index
    %2 = vector.load %arg3[%c0_2, %c20, %c0_3] : memref<8x24x24xf32, #tpu.memory_space<vmem>>, vector<8x4x24xf32>
    tpu.vector_store %arg3[%c0_2, %c20, %c0_3], %0 {strides = array<i32>} : memref<8x24x24xf32, #tpu.memory_space<vmem>>, vector<8x4x24xf32>,
    %cst_4 = arith.constant 0.000000e+00 : f32
    %3 = vector.broadcast %cst_4 : f32 to vector<8x16x4xf32>
    %c0_5 = arith.constant 0 : index
    %c4 = arith.constant 4 : index
    %c0_6 = arith.constant 0 : index
    %4 = vector.load %arg3[%c0_5, %c4, %c0_6] : memref<8x24x24xf32, #tpu.memory_space<vmem>>, vector<8x16x4xf32>
    tpu.vector_store %arg3[%c0_5, %c4, %c0_6], %3 {strides = array<i32>} : memref<8x24x24xf32, #tpu.memory_space<vmem>>, vector<8x16x4xf32>,
    %c0_7 = arith.constant 0 : index
    %c4_8 = arith.constant 4 : index
    %c20_9 = arith.constant 20 : index
    %5 = vector.load %arg3[%c0_7, %c4_8, %c20_9] : memref<8x24x24xf32, #tpu.memory_space<vmem>>, vector<8x16x4xf32>
    tpu.vector_store %arg3[%c0_7, %c4_8, %c20_9], %3 {strides = array<i32>} : memref<8x24x24xf32, #tpu.memory_space<vmem>>, vector<8x16x4xf32>,
    %c0_10 = arith.constant 0 : index
    %c0_11 = arith.constant 0 : index
    %c0_12 = arith.constant 0 : index
    %6 = vector.load %arg1[%c0_10, %c0_11, %c0_12] : memref<8x16x16xf32, #tpu.memory_space<vmem>>, vector<8x16x16xf32>
    %c0_13 = arith.constant 0 : index
    %c4_14 = arith.constant 4 : index
    %c4_15 = arith.constant 4 : index
    %7 = vector.load %arg3[%c0_13, %c4_14, %c4_15] : memref<8x24x24xf32, #tpu.memory_space<vmem>>, vector<8x16x16xf32>
    tpu.vector_store %arg3[%c0_13, %c4_14, %c4_15], %6 {strides = array<i32>} : memref<8x24x24xf32, #tpu.memory_space<vmem>>, vector<8x16x16xf32>,
    %c0_16 = arith.constant 0 : index
    %c0_17 = arith.constant 0 : index
    %c0_18 = arith.constant 0 : index
    %8 = vector.load %arg3[%c0_16, %c0_17, %c0_18] : memref<8x24x24xf32, #tpu.memory_space<vmem>>, vector<8x24x24xf32>
    %9 = vector.extract_strided_slice %8 {offsets = [0, 0, 4], sizes = [8, 24, 16], strides = [1, 1, 1]} : vector<8x24x24xf32> to vector<8x24x16xf32>
    %cst_19 = arith.constant 0.398943484 : f32
    %10 = vector.broadcast %cst_19 : f32 to vector<8x24x16xf32>
    %11 = arith.mulf %10, %9 : vector<8x24x16xf32>
    %12 = vector.extract_strided_slice %8 {offsets = [0, 0, 3], sizes = [8, 24, 16], strides = [1, 1, 1]} : vector<8x24x24xf32> to vector<8x24x16xf32>
    %13 = vector.extract_strided_slice %8 {offsets = [0, 0, 5], sizes = [8, 24, 16], strides = [1, 1, 1]} : vector<8x24x24xf32> to vector<8x24x16xf32>
    %14 = arith.addf %12, %13 : vector<8x24x16xf32>
    %cst_20 = arith.constant 0.241971448 : f32
    %15 = vector.broadcast %cst_20 : f32 to vector<8x24x16xf32>
    %16 = arith.mulf %15, %14 : vector<8x24x16xf32>
    %17 = arith.addf %11, %16 : vector<8x24x16xf32>
    %18 = vector.extract_strided_slice %8 {offsets = [0, 0, 2], sizes = [8, 24, 16], strides = [1, 1, 1]} : vector<8x24x24xf32> to vector<8x24x16xf32>
    %19 = vector.extract_strided_slice %8 {offsets = [0, 0, 6], sizes = [8, 24, 16], strides = [1, 1, 1]} : vector<8x24x24xf32> to vector<8x24x16xf32>
    %20 = arith.addf %18, %19 : vector<8x24x16xf32>
    %cst_21 = arith.constant 0.0539911278 : f32
    %21 = vector.broadcast %cst_21 : f32 to vector<8x24x16xf32>
    %22 = arith.mulf %21, %20 : vector<8x24x16xf32>
    %23 = arith.addf %17, %22 : vector<8x24x16xf32>
    %24 = vector.extract_strided_slice %8 {offsets = [0, 0, 1], sizes = [8, 24, 16], strides = [1, 1, 1]} : vector<8x24x24xf32> to vector<8x24x16xf32>
    %25 = vector.extract_strided_slice %8 {offsets = [0, 0, 7], sizes = [8, 24, 16], strides = [1, 1, 1]} : vector<8x24x24xf32> to vector<8x24x16xf32>
    %26 = arith.addf %24, %25 : vector<8x24x16xf32>
    %cst_22 = arith.constant 0.00443186145 : f32
    %27 = vector.broadcast %cst_22 : f32 to vector<8x24x16xf32>
    %28 = arith.mulf %27, %26 : vector<8x24x16xf32>
    %29 = arith.addf %23, %28 : vector<8x24x16xf32>
    %30 = vector.extract_strided_slice %8 {offsets = [0, 0, 0], sizes = [8, 24, 16], strides = [1, 1, 1]} : vector<8x24x24xf32> to vector<8x24x16xf32>
    %31 = vector.extract_strided_slice %8 {offsets = [0, 0, 8], sizes = [8, 24, 16], strides = [1, 1, 1]} : vector<8x24x24xf32> to vector<8x24x16xf32>
    %32 = arith.addf %30, %31 : vector<8x24x16xf32>
    %cst_23 = arith.constant 1.33830617E-4 : f32
    %33 = vector.broadcast %cst_23 : f32 to vector<8x24x16xf32>
    %34 = arith.mulf %33, %32 : vector<8x24x16xf32>
    %35 = arith.addf %29, %34 : vector<8x24x16xf32>
    %36 = vector.extract_strided_slice %35 {offsets = [0, 4, 0], sizes = [8, 16, 16], strides = [1, 1, 1]} : vector<8x24x16xf32> to vector<8x16x16xf32>
    %cst_24 = arith.constant 0.398943484 : f32
    %37 = vector.broadcast %cst_24 : f32 to vector<8x16x16xf32>
    %38 = arith.mulf %37, %36 : vector<8x16x16xf32>
    %39 = vector.extract_strided_slice %35 {offsets = [0, 3, 0], sizes = [8, 16, 16], strides = [1, 1, 1]} : vector<8x24x16xf32> to vector<8x16x16xf32>
    %40 = vector.extract_strided_slice %35 {offsets = [0, 5, 0], sizes = [8, 16, 16], strides = [1, 1, 1]} : vector<8x24x16xf32> to vector<8x16x16xf32>
    %41 = arith.addf %39, %40 : vector<8x16x16xf32>
    %cst_25 = arith.constant 0.241971448 : f32
    %42 = vector.broadcast %cst_25 : f32 to vector<8x16x16xf32>
    %43 = arith.mulf %42, %41 : vector<8x16x16xf32>
    %44 = arith.addf %38, %43 : vector<8x16x16xf32>
    %45 = vector.extract_strided_slice %35 {offsets = [0, 2, 0], sizes = [8, 16, 16], strides = [1, 1, 1]} : vector<8x24x16xf32> to vector<8x16x16xf32>
    %46 = vector.extract_strided_slice %35 {offsets = [0, 6, 0], sizes = [8, 16, 16], strides = [1, 1, 1]} : vector<8x24x16xf32> to vector<8x16x16xf32>
    %47 = arith.addf %45, %46 : vector<8x16x16xf32>
    %cst_26 = arith.constant 0.0539911278 : f32
    %48 = vector.broadcast %cst_26 : f32 to vector<8x16x16xf32>
    %49 = arith.mulf %48, %47 : vector<8x16x16xf32>
    %50 = arith.addf %44, %49 : vector<8x16x16xf32>
    %51 = vector.extract_strided_slice %35 {offsets = [0, 1, 0], sizes = [8, 16, 16], strides = [1, 1, 1]} : vector<8x24x16xf32> to vector<8x16x16xf32>
    %52 = vector.extract_strided_slice %35 {offsets = [0, 7, 0], sizes = [8, 16, 16], strides = [1, 1, 1]} : vector<8x24x16xf32> to vector<8x16x16xf32>
    %53 = arith.addf %51, %52 : vector<8x16x16xf32>
    %cst_27 = arith.constant 0.00443186145 : f32
    %54 = vector.broadcast %cst_27 : f32 to vector<8x16x16xf32>
    %55 = arith.mulf %54, %53 : vector<8x16x16xf32>
    %56 = arith.addf %50, %55 : vector<8x16x16xf32>
    %57 = vector.extract_strided_slice %35 {offsets = [0, 0, 0], sizes = [8, 16, 16], strides = [1, 1, 1]} : vector<8x24x16xf32> to vector<8x16x16xf32>
    %58 = vector.extract_strided_slice %35 {offsets = [0, 8, 0], sizes = [8, 16, 16], strides = [1, 1, 1]} : vector<8x24x16xf32> to vector<8x16x16xf32>
    %59 = arith.addf %57, %58 : vector<8x16x16xf32>
    %cst_28 = arith.constant 1.33830617E-4 : f32
    %60 = vector.broadcast %cst_28 : f32 to vector<8x16x16xf32>
    %61 = arith.mulf %60, %59 : vector<8x16x16xf32>
    %62 = arith.addf %56, %61 : vector<8x16x16xf32>
    %c0_29 = arith.constant 0 : index
    %c0_30 = arith.constant 0 : index
    %c0_31 = arith.constant 0 : index
    %63 = vector.load %arg2[%c0_29, %c0_30, %c0_31] : memref<8x16x16xf32, #tpu.memory_space<vmem>>, vector<8x16x16xf32>
    tpu.vector_store %arg2[%c0_29, %c0_30, %c0_31], %62 {strides = array<i32>} : memref<8x16x16xf32, #tpu.memory_space<vmem>>, vector<8x16x16xf32>,
    return
  }
  func.func @transform_0(%arg0: i32) -> (i32, i32, i32) {
    %c0_i32 = arith.constant 0 : i32
    %c0_i32_0 = arith.constant 0 : i32
    %c0_i32_1 = arith.constant 0 : i32
    return %arg0, %c0_i32, %c0_i32_0 : i32, i32, i32
  }
  func.func @transform_1(%arg0: i32) -> (i32, i32, i32) {
    %c0_i32 = arith.constant 0 : i32
    %c0_i32_0 = arith.constant 0 : i32
    %c0_i32_1 = arith.constant 0 : i32
    return %arg0, %c0_i32, %c0_i32_0 : i32, i32, i32
  }
}

</mosaic_0001>

<llo_original>
// kernel: tpu_custom_call.1
$region0: #{tpu_custom_call.1}
  #allocation0 [shape = 'u32[]', space=smem, size = 0x4, offset = 0x4, fixed_abs, tag = 'smem constant byte address 0x4 - core index']
  #allocation1 [shape = 'u32[144,128]{1,0:T(1,128)}', space=vmem, size = 0x12000, scoped, tag = 'internal scratch']
  #allocation2 [shape = 'f32[8,24,24]{2,1,0:T(8,128)}', space=vmem, size = 0x18000, scoped, tag = 'scratch operand']
  %s0 = inlined_call_operand.hbm [shape: f32[8,16,16], index: 0, kind: input, shape index: {}]
  %s1 = inlined_call_operand.hbm [shape: f32[8,16,16], index: 1, kind: output, shape index: {}]
  %s2 = sld [smem:[#allocation0]]
  $region18: #{tpu_custom_call.1} parent=0
    _
  %s4 = ssub.s32 1, %s2
  %s5 = scalar_select 0, %s4, %s2
  $region1: #{tpu_custom_call.1} parent=0
    #allocation3 [shape = 'u8[65536]{0}', space=vmem, size = 0x10000, scoped, tag = 'input window, operand 0, single buffered']
    #allocation4 [shape = 's32[1]{0}', space=sflag, size = 0x4, scoped, tag = 'scoped memory for tpu_custom_call.1']
    #allocation5 [shape = 's32[1]{0}', space=sflag, size = 0x4, scoped, tag = 'scoped memory for tpu_custom_call.1']
    #allocation6 [shape = 'u8[65536]{0}', space=vmem, size = 0x10000, scoped, tag = 'output window, operand 0, single buffered']
    %6 = vsyncpa [#allocation4], 0
    %7 = vsyncpa [#allocation5], 0
    // Predicated region
    $region2: #{tpu_custom_call.1} parent=1 // pred_check
      _
    $region3: #{tpu_custom_call.1} parent=1 // pred_check_branch
      %9 = sbr.rel (0) target = $region5
    $region4: #{tpu_custom_call.1} parent=1 // pred_region
      %s11 = ssub.s32 2048, 2048
      %12 = vsyncadd [#allocation4], %s11
      %s13 = sshll.u32 [#allocation3], 4
      %s14 = int_to_ptr.vmem [resolvable:$true] %s13
      %19 = dma.hbm_to_vmem [thread:$0]  %s0, 2048, %s14, [#allocation4], 128, 128, 8
    $region5: #{tpu_custom_call.1} parent=1 // pred_fallthru
      _
    // Predicated region
    $region6: #{tpu_custom_call.1} parent=1 // pred_check
      _
    $region7: #{tpu_custom_call.1} parent=1 // pred_check_branch
      %21 = sbr.rel (0) target = $region9
    $region8: #{tpu_custom_call.1} parent=1 // pred_region
      %22 = dma.done [#allocation4], 2048
    $region9: #{tpu_custom_call.1} parent=1 // pred_fallthru
      _
    %vm23 = vcmask 191488
    %24 = vst.msk [vmem:[#allocation2] sm:$0xf] %vm23, 0.0
    %25 = vst.msk [vmem:[#allocation2 + $0x18] sm:$0xf] %vm23, 0.0
    %26 = vst.msk [vmem:[#allocation2 + $0x30] sm:$0xf] %vm23, 0.0
    %27 = vst.msk [vmem:[#allocation2 + $0x48] sm:$0xf] %vm23, 0.0
    %28 = vst.msk [vmem:[#allocation2 + $0x60] sm:$0xf] %vm23, 0.0
    %29 = vst.msk [vmem:[#allocation2 + $0x78] sm:$0xf] %vm23, 0.0
    %30 = vst.msk [vmem:[#allocation2 + $0x90] sm:$0xf] %vm23, 0.0
    %31 = vst.msk [vmem:[#allocation2 + $0xa8] sm:$0xf] %vm23, 0.0
    %32 = vst.msk [vmem:[#allocation2 + $0x14] sm:$0xf] %vm23, 0.0
    %33 = vst.msk [vmem:[#allocation2 + $0x2c] sm:$0xf] %vm23, 0.0
    %34 = vst.msk [vmem:[#allocation2 + $0x44] sm:$0xf] %vm23, 0.0
    %35 = vst.msk [vmem:[#allocation2 + $0x5c] sm:$0xf] %vm23, 0.0
    %36 = vst.msk [vmem:[#allocation2 + $0x74] sm:$0xf] %vm23, 0.0
    %37 = vst.msk [vmem:[#allocation2 + $0x8c] sm:$0xf] %vm23, 0.0
    %38 = vst.msk [vmem:[#allocation2 + $0xa4] sm:$0xf] %vm23, 0.0
    %39 = vst.msk [vmem:[#allocation2 + $0xbc] sm:$0xf] %vm23, 0.0
    %vm40 = vcmask 31744
    %41 = vst.msk [vmem:[#allocation2 + $0x4] sm:$0xff] %vm40, 0.0
    %42 = vst.msk [vmem:[#allocation2 + $0xc] sm:$0xff] %vm40, 0.0
    %43 = vst.msk [vmem:[#allocation2 + $0x1c] sm:$0xff] %vm40, 0.0
    %44 = vst.msk [vmem:[#allocation2 + $0x24] sm:$0xff] %vm40, 0.0
    %45 = vst.msk [vmem:[#allocation2 + $0x34] sm:$0xff] %vm40, 0.0
    %46 = vst.msk [vmem:[#allocation2 + $0x3c] sm:$0xff] %vm40, 0.0
    %47 = vst.msk [vmem:[#allocation2 + $0x4c] sm:$0xff] %vm40, 0.0
    %48 = vst.msk [vmem:[#allocation2 + $0x54] sm:$0xff] %vm40, 0.0
    %49 = vst.msk [vmem:[#allocation2 + $0x64] sm:$0xff] %vm40, 0.0
    %50 = vst.msk [vmem:[#allocation2 + $0x6c] sm:$0xff] %vm40, 0.0
    %51 = vst.msk [vmem:[#allocation2 + $0x7c] sm:$0xff] %vm40, 0.0
    %52 = vst.msk [vmem:[#allocation2 + $0x84] sm:$0xff] %vm40, 0.0
    %53 = vst.msk [vmem:[#allocation2 + $0x94] sm:$0xff] %vm40, 0.0
    %54 = vst.msk [vmem:[#allocation2 + $0x9c] sm:$0xff] %vm40, 0.0
    %55 = vst.msk [vmem:[#allocation2 + $0xac] sm:$0xff] %vm40, 0.0
    %56 = vst.msk [vmem:[#allocation2 + $0xb4] sm:$0xff] %vm40, 0.0
    %vm57 = vcmask 195744
    %58 = vst.msk [vmem:[#allocation2 + $0x4] sm:$0xff] %vm57, 0.0
    %59 = vst.msk [vmem:[#allocation2 + $0xc] sm:$0xff] %vm57, 0.0
    %60 = vst.msk [vmem:[#allocation2 + $0x1c] sm:$0xff] %vm57, 0.0
    %61 = vst.msk [vmem:[#allocation2 + $0x24] sm:$0xff] %vm57, 0.0
    %62 = vst.msk [vmem:[#allocation2 + $0x34] sm:$0xff] %vm57, 0.0
    %63 = vst.msk [vmem:[#allocation2 + $0x3c] sm:$0xff] %vm57, 0.0
    %64 = vst.msk [vmem:[#allocation2 + $0x4c] sm:$0xff] %vm57, 0.0
    %65 = vst.msk [vmem:[#allocation2 + $0x54] sm:$0xff] %vm57, 0.0
    %66 = vst.msk [vmem:[#allocation2 + $0x64] sm:$0xff] %vm57, 0.0
    %67 = vst.msk [vmem:[#allocation2 + $0x6c] sm:$0xff] %vm57, 0.0
    %68 = vst.msk [vmem:[#allocation2 + $0x7c] sm:$0xff] %vm57, 0.0
    %69 = vst.msk [vmem:[#allocation2 + $0x84] sm:$0xff] %vm57, 0.0
    %70 = vst.msk [vmem:[#allocation2 + $0x94] sm:$0xff] %vm57, 0.0
    %71 = vst.msk [vmem:[#allocation2 + $0x9c] sm:$0xff] %vm57, 0.0
    %72 = vst.msk [vmem:[#allocation2 + $0xac] sm:$0xff] %vm57, 0.0
    %73 = vst.msk [vmem:[#allocation2 + $0xb4] sm:$0xff] %vm57, 0.0
    %v74 = vld [vmem:[#allocation3] sm:$0xff]
    %v75 = vld [vmem:[#allocation3 + $0x8] sm:$0xff]
    %v76 = vld [vmem:[#allocation3 + $0x10] sm:$0xff]
    %v77 = vld [vmem:[#allocation3 + $0x18] sm:$0xff]
    %v78 = vld [vmem:[#allocation3 + $0x20] sm:$0xff]
    %v79 = vld [vmem:[#allocation3 + $0x28] sm:$0xff]
    %v80 = vld [vmem:[#allocation3 + $0x30] sm:$0xff]
    %v81 = vld [vmem:[#allocation3 + $0x38] sm:$0xff]
    %v82 = vld [vmem:[#allocation3 + $0x40] sm:$0xff]
    %v83 = vld [vmem:[#allocation3 + $0x48] sm:$0xff]
    %v84 = vld [vmem:[#allocation3 + $0x50] sm:$0xff]
    %v85 = vld [vmem:[#allocation3 + $0x58] sm:$0xff]
    %v86 = vld [vmem:[#allocation3 + $0x60] sm:$0xff]
    %v87 = vld [vmem:[#allocation3 + $0x68] sm:$0xff]
    %v88 = vld [vmem:[#allocation3 + $0x70] sm:$0xff]
    %v89 = vld [vmem:[#allocation3 + $0x78] sm:$0xff]
    %106 = vrot.lane.b32.xlu0 %v74, 4
    %v107 = vpop.permute.xlu0 %106
    %108 = vrot.lane.b32.xlu0 %v75, 4
    %v109 = vpop.permute.xlu0 %108
    %110 = vrot.lane.b32.xlu0 %v76, 4
    %v111 = vpop.permute.xlu0 %110
    %112 = vrot.lane.b32.xlu0 %v77, 4
    %v113 = vpop.permute.xlu0 %112
    %114 = vrot.lane.b32.xlu0 %v78, 4
    %v115 = vpop.permute.xlu0 %114
    %116 = vrot.lane.b32.xlu0 %v79, 4
    %v117 = vpop.permute.xlu0 %116
    %118 = vrot.lane.b32.xlu0 %v80, 4
    %v119 = vpop.permute.xlu0 %118
    %120 = vrot.lane.b32.xlu0 %v81, 4
    %v121 = vpop.permute.xlu0 %120
    %122 = vrot.lane.b32.xlu0 %v82, 4
    %v123 = vpop.permute.xlu0 %122
    %124 = vrot.lane.b32.xlu0 %v83, 4
    %v125 = vpop.permute.xlu0 %124
    %126 = vrot.lane.b32.xlu0 %v84, 4
    %v127 = vpop.permute.xlu0 %126
    %128 = vrot.lane.b32.xlu0 %v85, 4
    %v129 = vpop.permute.xlu0 %128
    %130 = vrot.lane.b32.xlu0 %v86, 4
    %v131 = vpop.permute.xlu0 %130
    %132 = vrot.lane.b32.xlu0 %v87, 4
    %v133 = vpop.permute.xlu0 %132
    %134 = vrot.lane.b32.xlu0 %v88, 4
    %v135 = vpop.permute.xlu0 %134
    %136 = vrot.lane.b32.xlu0 %v89, 4
    %v137 = vpop.permute.xlu0 %136
    %vm154 = vcmask 162848
    %155 = vst.msk [vmem:[#allocation2 + $0x4] sm:$0xff] %vm154, %v107
    %156 = vst.msk [vmem:[#allocation2 + $0xc] sm:$0xff] %vm154, %v109
    %157 = vst.msk [vmem:[#allocation2 + $0x1c] sm:$0xff] %vm154, %v111
    %158 = vst.msk [vmem:[#allocation2 + $0x24] sm:$0xff] %vm154, %v113
    %159 = vst.msk [vmem:[#allocation2 + $0x34] sm:$0xff] %vm154, %v115
    %160 = vst.msk [vmem:[#allocation2 + $0x3c] sm:$0xff] %vm154, %v117
    %161 = vst.msk [vmem:[#allocation2 + $0x4c] sm:$0xff] %vm154, %v119
    %162 = vst.msk [vmem:[#allocation2 + $0x54] sm:$0xff] %vm154, %v121
    %163 = vst.msk [vmem:[#allocation2 + $0x64] sm:$0xff] %vm154, %v123
    %164 = vst.msk [vmem:[#allocation2 + $0x6c] sm:$0xff] %vm154, %v125
    %165 = vst.msk [vmem:[#allocation2 + $0x7c] sm:$0xff] %vm154, %v127
    %166 = vst.msk [vmem:[#allocation2 + $0x84] sm:$0xff] %vm154, %v129
    %167 = vst.msk [vmem:[#allocation2 + $0x94] sm:$0xff] %vm154, %v131
    %168 = vst.msk [vmem:[#allocation2 + $0x9c] sm:$0xff] %vm154, %v133
    %169 = vst.msk [vmem:[#allocation2 + $0xac] sm:$0xff] %vm154, %v135
    %170 = vst.msk [vmem:[#allocation2 + $0xb4] sm:$0xff] %vm154, %v137
    %v171 = vld [vmem:[#allocation2] sm:$0xff]
    %v172 = vld [vmem:[#allocation2 + $0x8] sm:$0xff]
    %v173 = vld [vmem:[#allocation2 + $0x10] sm:$0xff]
    %v174 = vld [vmem:[#allocation2 + $0x18] sm:$0xff]
    %v175 = vld [vmem:[#allocation2 + $0x20] sm:$0xff]
    %v176 = vld [vmem:[#allocation2 + $0x28] sm:$0xff]
    %v177 = vld [vmem:[#allocation2 + $0x30] sm:$0xff]
    %v178 = vld [vmem:[#allocation2 + $0x38] sm:$0xff]
    %v179 = vld [vmem:[#allocation2 + $0x40] sm:$0xff]
    %v180 = vld [vmem:[#allocation2 + $0x48] sm:$0xff]
    %v181 = vld [vmem:[#allocation2 + $0x50] sm:$0xff]
    %v182 = vld [vmem:[#allocation2 + $0x58] sm:$0xff]
    %v183 = vld [vmem:[#allocation2 + $0x60] sm:$0xff]
    %v184 = vld [vmem:[#allocation2 + $0x68] sm:$0xff]
    %v185 = vld [vmem:[#allocation2 + $0x70] sm:$0xff]
    %v186 = vld [vmem:[#allocation2 + $0x78] sm:$0xff]
    %v187 = vld [vmem:[#allocation2 + $0x80] sm:$0xff]
    %v188 = vld [vmem:[#allocation2 + $0x88] sm:$0xff]
    %v189 = vld [vmem:[#allocation2 + $0x90] sm:$0xff]
    %v190 = vld [vmem:[#allocation2 + $0x98] sm:$0xff]
    %v191 = vld [vmem:[#allocation2 + $0xa0] sm:$0xff]
    %v192 = vld [vmem:[#allocation2 + $0xa8] sm:$0xff]
    %v193 = vld [vmem:[#allocation2 + $0xb0] sm:$0xff]
    %v194 = vld [vmem:[#allocation2 + $0xb8] sm:$0xff]
    %v195 = vmul.f32 %v171, 0.39894348
    %v196 = vmul.f32 %v172, 0.39894348
    %v197 = vmul.f32 %v173, 0.39894348
    %v198 = vmul.f32 %v174, 0.39894348
    %v199 = vmul.f32 %v175, 0.39894348
    %v200 = vmul.f32 %v176, 0.39894348
    %v201 = vmul.f32 %v177, 0.39894348
    %v202 = vmul.f32 %v178, 0.39894348
    %v203 = vmul.f32 %v179, 0.39894348
    %v204 = vmul.f32 %v180, 0.39894348
    %v205 = vmul.f32 %v181, 0.39894348
    %v206 = vmul.f32 %v182, 0.39894348
    %v207 = vmul.f32 %v183, 0.39894348
    %v208 = vmul.f32 %v184, 0.39894348
    %v209 = vmul.f32 %v185, 0.39894348
    %v210 = vmul.f32 %v186, 0.39894348
    %v211 = vmul.f32 %v187, 0.39894348
    %v212 = vmul.f32 %v188, 0.39894348
    %v213 = vmul.f32 %v189, 0.39894348
    %v214 = vmul.f32 %v190, 0.39894348
    %v215 = vmul.f32 %v191, 0.39894348
    %v216 = vmul.f32 %v192, 0.39894348
    %v217 = vmul.f32 %v193, 0.39894348
    %v218 = vmul.f32 %v194, 0.39894348
    %243 = vrot.lane.b32.xlu0 %v171, 126
    %v244 = vpop.permute.xlu0 %243
    %245 = vrot.lane.b32.xlu0 %v172, 126
    %v246 = vpop.permute.xlu0 %245
    %247 = vrot.lane.b32.xlu0 %v173, 126
    %v248 = vpop.permute.xlu0 %247
    %249 = vrot.lane.b32.xlu0 %v174, 126
    %v250 = vpop.permute.xlu0 %249
    %251 = vrot.lane.b32.xlu0 %v175, 126
    %v252 = vpop.permute.xlu0 %251
    %253 = vrot.lane.b32.xlu0 %v176, 126
    %v254 = vpop.permute.xlu0 %253
    %255 = vrot.lane.b32.xlu0 %v177, 126
    %v256 = vpop.permute.xlu0 %255
    %257 = vrot.lane.b32.xlu0 %v178, 126
    %v258 = vpop.permute.xlu0 %257
    %259 = vrot.lane.b32.xlu0 %v179, 126
    %v260 = vpop.permute.xlu0 %259
    %261 = vrot.lane.b32.xlu0 %v180, 126
    %v262 = vpop.permute.xlu0 %261
    %263 = vrot.lane.b32.xlu0 %v181, 126
    %v264 = vpop.permute.xlu0 %263
    %265 = vrot.lane.b32.xlu0 %v182, 126
    %v266 = vpop.permute.xlu0 %265
    %267 = vrot.lane.b32.xlu0 %v183, 126
    %v268 = vpop.permute.xlu0 %267
    %269 = vrot.lane.b32.xlu0 %v184, 126
    %v270 = vpop.permute.xlu0 %269
    %271 = vrot.lane.b32.xlu0 %v185, 126
    %v272 = vpop.permute.xlu0 %271
    %273 = vrot.lane.b32.xlu0 %v186, 126
    %v274 = vpop.permute.xlu0 %273
    %275 = vrot.lane.b32.xlu0 %v187, 126
    %v276 = vpop.permute.xlu0 %275
    %277 = vrot.lane.b32.xlu0 %v188, 126
    %v278 = vpop.permute.xlu0 %277
    %279 = vrot.lane.b32.xlu0 %v189, 126
    %v280 = vpop.permute.xlu0 %279
    %281 = vrot.lane.b32.xlu0 %v190, 126
    %v282 = vpop.permute.xlu0 %281
    %283 = vrot.lane.b32.xlu0 %v191, 126
    %v284 = vpop.permute.xlu0 %283
    %285 = vrot.lane.b32.xlu0 %v192, 126
    %v286 = vpop.permute.xlu0 %285
    %287 = vrot.lane.b32.xlu0 %v193, 126
    %v288 = vpop.permute.xlu0 %287
    %289 = vrot.lane.b32.xlu0 %v194, 126
    %v290 = vpop.permute.xlu0 %289
    %v315 = vadd.f32 %v171, %v244
    %v316 = vadd.f32 %v172, %v246
    %v317 = vadd.f32 %v173, %v248
    %v318 = vadd.f32 %v174, %v250
    %v319 = vadd.f32 %v175, %v252
    %v320 = vadd.f32 %v176, %v254
    %v321 = vadd.f32 %v177, %v256
    %v322 = vadd.f32 %v178, %v258
    %v323 = vadd.f32 %v179, %v260
    %v324 = vadd.f32 %v180, %v262
    %v325 = vadd.f32 %v181, %v264
    %v326 = vadd.f32 %v182, %v266
    %v327 = vadd.f32 %v183, %v268
    %v328 = vadd.f32 %v184, %v270
    %v329 = vadd.f32 %v185, %v272
    %v330 = vadd.f32 %v186, %v274
    %v331 = vadd.f32 %v187, %v276
    %v332 = vadd.f32 %v188, %v278
    %v333 = vadd.f32 %v189, %v280
    %v334 = vadd.f32 %v190, %v282
    %v335 = vadd.f32 %v191, %v284
    %v336 = vadd.f32 %v192, %v286
    %v337 = vadd.f32 %v193, %v288
    %v338 = vadd.f32 %v194, %v290
    %v339 = vmul.f32 %v315, 0.24197145
    %v340 = vmul.f32 %v316, 0.24197145
    %v341 = vmul.f32 %v317, 0.24197145
    %v342 = vmul.f32 %v318, 0.24197145
    %v343 = vmul.f32 %v319, 0.24197145
    %v344 = vmul.f32 %v320, 0.24197145
    %v345 = vmul.f32 %v321, 0.24197145
    %v346 = vmul.f32 %v322, 0.24197145
    %v347 = vmul.f32 %v323, 0.24197145
    %v348 = vmul.f32 %v324, 0.24197145
    %v349 = vmul.f32 %v325, 0.24197145
    %v350 = vmul.f32 %v326, 0.24197145
    %v351 = vmul.f32 %v327, 0.24197145
    %v352 = vmul.f32 %v328, 0.24197145
    %v353 = vmul.f32 %v329, 0.24197145
    %v354 = vmul.f32 %v330, 0.24197145
    %v355 = vmul.f32 %v331, 0.24197145
    %v356 = vmul.f32 %v332, 0.24197145
    %v357 = vmul.f32 %v333, 0.24197145
    %v358 = vmul.f32 %v334, 0.24197145
    %v359 = vmul.f32 %v335, 0.24197145
    %v360 = vmul.f32 %v336, 0.24197145
    %v361 = vmul.f32 %v337, 0.24197145
    %v362 = vmul.f32 %v338, 0.24197145
    %387 = vrot.lane.b32.xlu0 %v339, 1
    %v388 = vpop.permute.xlu0 %387
    %389 = vrot.lane.b32.xlu0 %v340, 1
    %v390 = vpop.permute.xlu0 %389
    %391 = vrot.lane.b32.xlu0 %v341, 1
    %v392 = vpop.permute.xlu0 %391
    %393 = vrot.lane.b32.xlu0 %v342, 1
    %v394 = vpop.permute.xlu0 %393
    %395 = vrot.lane.b32.xlu0 %v343, 1
    %v396 = vpop.permute.xlu0 %395
    %397 = vrot.lane.b32.xlu0 %v344, 1
    %v398 = vpop.permute.xlu0 %397
    %399 = vrot.lane.b32.xlu0 %v345, 1
    %v400 = vpop.permute.xlu0 %399
    %401 = vrot.lane.b32.xlu0 %v346, 1
    %v402 = vpop.permute.xlu0 %401
    %403 = vrot.lane.b32.xlu0 %v347, 1
    %v404 = vpop.permute.xlu0 %403
    %405 = vrot.lane.b32.xlu0 %v348, 1
    %v406 = vpop.permute.xlu0 %405
    %407 = vrot.lane.b32.xlu0 %v349, 1
    %v408 = vpop.permute.xlu0 %407
    %409 = vrot.lane.b32.xlu0 %v350, 1
    %v410 = vpop.permute.xlu0 %409
    %411 = vrot.lane.b32.xlu0 %v351, 1
    %v412 = vpop.permute.xlu0 %411
    %413 = vrot.lane.b32.xlu0 %v352, 1
    %v414 = vpop.permute.xlu0 %413
    %415 = vrot.lane.b32.xlu0 %v353, 1
    %v416 = vpop.permute.xlu0 %415
    %417 = vrot.lane.b32.xlu0 %v354, 1
    %v418 = vpop.permute.xlu0 %417
    %419 = vrot.lane.b32.xlu0 %v355, 1
    %v420 = vpop.permute.xlu0 %419
    %421 = vrot.lane.b32.xlu0 %v356, 1
    %v422 = vpop.permute.xlu0 %421
    %423 = vrot.lane.b32.xlu0 %v357, 1
    %v424 = vpop.permute.xlu0 %423
    %425 = vrot.lane.b32.xlu0 %v358, 1
    %v426 = vpop.permute.xlu0 %425
    %427 = vrot.lane.b32.xlu0 %v359, 1
    %v428 = vpop.permute.xlu0 %427
    %429 = vrot.lane.b32.xlu0 %v360, 1
    %v430 = vpop.permute.xlu0 %429
    %431 = vrot.lane.b32.xlu0 %v361, 1
    %v432 = vpop.permute.xlu0 %431
    %433 = vrot.lane.b32.xlu0 %v362, 1
    %v434 = vpop.permute.xlu0 %433
    %v459 = vadd.f32 %v195, %v388
    %v460 = vadd.f32 %v196, %v390
    %v461 = vadd.f32 %v197, %v392
    %v462 = vadd.f32 %v198, %v394
    %v463 = vadd.f32 %v199, %v396
    %v464 = vadd.f32 %v200, %v398
    %v465 = vadd.f32 %v201, %v400
    %v466 = vadd.f32 %v202, %v402
    %v467 = vadd.f32 %v203, %v404
    %v468 = vadd.f32 %v204, %v406
    %v469 = vadd.f32 %v205, %v408
    %v470 = vadd.f32 %v206, %v410
    %v471 = vadd.f32 %v207, %v412
    %v472 = vadd.f32 %v208, %v414
    %v473 = vadd.f32 %v209, %v416
    %v474 = vadd.f32 %v210, %v418
    %v475 = vadd.f32 %v211, %v420
    %v476 = vadd.f32 %v212, %v422
    %v477 = vadd.f32 %v213, %v424
    %v478 = vadd.f32 %v214, %v426
    %v479 = vadd.f32 %v215, %v428
    %v480 = vadd.f32 %v216, %v430
    %v481 = vadd.f32 %v217, %v432
    %v482 = vadd.f32 %v218, %v434
    %483 = vrot.lane.b32.xlu0 %v171, 124
    %v484 = vpop.permute.xlu0 %483
    %485 = vrot.lane.b32.xlu0 %v172, 124
    %v486 = vpop.permute.xlu0 %485
    %487 = vrot.lane.b32.xlu0 %v173, 124
    %v488 = vpop.permute.xlu0 %487
    %489 = vrot.lane.b32.xlu0 %v174, 124
    %v490 = vpop.permute.xlu0 %489
    %491 = vrot.lane.b32.xlu0 %v175, 124
    %v492 = vpop.permute.xlu0 %491
    %493 = vrot.lane.b32.xlu0 %v176, 124
    %v494 = vpop.permute.xlu0 %493
    %495 = vrot.lane.b32.xlu0 %v177, 124
    %v496 = vpop.permute.xlu0 %495
    %497 = vrot.lane.b32.xlu0 %v178, 124
    %v498 = vpop.permute.xlu0 %497
    %499 = vrot.lane.b32.xlu0 %v179, 124
    %v500 = vpop.permute.xlu0 %499
    %501 = vrot.lane.b32.xlu0 %v180, 124
    %v502 = vpop.permute.xlu0 %501
    %503 = vrot.lane.b32.xlu0 %v181, 124
    %v504 = vpop.permute.xlu0 %503
    %505 = vrot.lane.b32.xlu0 %v182, 124
    %v506 = vpop.permute.xlu0 %505
    %507 = vrot.lane.b32.xlu0 %v183, 124
    %v508 = vpop.permute.xlu0 %507
    %509 = vrot.lane.b32.xlu0 %v184, 124
    %v510 = vpop.permute.xlu0 %509
    %511 = vrot.lane.b32.xlu0 %v185, 124
    %v512 = vpop.permute.xlu0 %511
    %513 = vrot.lane.b32.xlu0 %v186, 124
    %v514 = vpop.permute.xlu0 %513
    %515 = vrot.lane.b32.xlu0 %v187, 124
    %v516 = vpop.permute.xlu0 %515
    %517 = vrot.lane.b32.xlu0 %v188, 124
    %v518 = vpop.permute.xlu0 %517
    %519 = vrot.lane.b32.xlu0 %v189, 124
    %v520 = vpop.permute.xlu0 %519
    %521 = vrot.lane.b32.xlu0 %v190, 124
    %v522 = vpop.permute.xlu0 %521
    %523 = vrot.lane.b32.xlu0 %v191, 124
    %v524 = vpop.permute.xlu0 %523
    %525 = vrot.lane.b32.xlu0 %v192, 124
    %v526 = vpop.permute.xlu0 %525
    %527 = vrot.lane.b32.xlu0 %v193, 124
    %v528 = vpop.permute.xlu0 %527
    %529 = vrot.lane.b32.xlu0 %v194, 124
    %v530 = vpop.permute.xlu0 %529
    %v555 = vadd.f32 %v171, %v484
    %v556 = vadd.f32 %v172, %v486
    %v557 = vadd.f32 %v173, %v488
    %v558 = vadd.f32 %v174, %v490
    %v559 = vadd.f32 %v175, %v492
    %v560 = vadd.f32 %v176, %v494
    %v561 = vadd.f32 %v177, %v496
    %v562 = vadd.f32 %v178, %v498
    %v563 = vadd.f32 %v179, %v500
    %v564 = vadd.f32 %v180, %v502
    %v565 = vadd.f32 %v181, %v504
    %v566 = vadd.f32 %v182, %v506
    %v567 = vadd.f32 %v183, %v508
    %v568 = vadd.f32 %v184, %v510
    %v569 = vadd.f32 %v185, %v512
    %v570 = vadd.f32 %v186, %v514
    %v571 = vadd.f32 %v187, %v516
    %v572 = vadd.f32 %v188, %v518
    %v573 = vadd.f32 %v189, %v520
    %v574 = vadd.f32 %v190, %v522
    %v575 = vadd.f32 %v191, %v524
    %v576 = vadd.f32 %v192, %v526
    %v577 = vadd.f32 %v193, %v528
    %v578 = vadd.f32 %v194, %v530
    %v579 = vmul.f32 %v555, 0.053991128
    %v580 = vmul.f32 %v556, 0.053991128
    %v581 = vmul.f32 %v557, 0.053991128
    %v582 = vmul.f32 %v558, 0.053991128
    %v583 = vmul.f32 %v559, 0.053991128
    %v584 = vmul.f32 %v560, 0.053991128
    %v585 = vmul.f32 %v561, 0.053991128
    %v586 = vmul.f32 %v562, 0.053991128
    %v587 = vmul.f32 %v563, 0.053991128
    %v588 = vmul.f32 %v564, 0.053991128
    %v589 = vmul.f32 %v565, 0.053991128
    %v590 = vmul.f32 %v566, 0.053991128
    %v591 = vmul.f32 %v567, 0.053991128
    %v592 = vmul.f32 %v568, 0.053991128
    %v593 = vmul.f32 %v569, 0.053991128
    %v594 = vmul.f32 %v570, 0.053991128
    %v595 = vmul.f32 %v571, 0.053991128
    %v596 = vmul.f32 %v572, 0.053991128
    %v597 = vmul.f32 %v573, 0.053991128
    %v598 = vmul.f32 %v574, 0.053991128
    %v599 = vmul.f32 %v575, 0.053991128
    %v600 = vmul.f32 %v576, 0.053991128
    %v601 = vmul.f32 %v577, 0.053991128
    %v602 = vmul.f32 %v578, 0.053991128
    %627 = vrot.lane.b32.xlu0 %v579, 2
    %v628 = vpop.permute.xlu0 %627
    %629 = vrot.lane.b32.xlu0 %v580, 2
    %v630 = vpop.permute.xlu0 %629
    %631 = vrot.lane.b32.xlu0 %v581, 2
    %v632 = vpop.permute.xlu0 %631
    %633 = vrot.lane.b32.xlu0 %v582, 2
    %v634 = vpop.permute.xlu0 %633
    %635 = vrot.lane.b32.xlu0 %v583, 2
    %v636 = vpop.permute.xlu0 %635
    %637 = vrot.lane.b32.xlu0 %v584, 2
    %v638 = vpop.permute.xlu0 %637
    %639 = vrot.lane.b32.xlu0 %v585, 2
    %v640 = vpop.permute.xlu0 %639
    %641 = vrot.lane.b32.xlu0 %v586, 2
    %v642 = vpop.permute.xlu0 %641
    %643 = vrot.lane.b32.xlu0 %v587, 2
    %v644 = vpop.permute.xlu0 %643
    %645 = vrot.lane.b32.xlu0 %v588, 2
    %v646 = vpop.permute.xlu0 %645
    %647 = vrot.lane.b32.xlu0 %v589, 2
    %v648 = vpop.permute.xlu0 %647
    %649 = vrot.lane.b32.xlu0 %v590, 2
    %v650 = vpop.permute.xlu0 %649
    %651 = vrot.lane.b32.xlu0 %v591, 2
    %v652 = vpop.permute.xlu0 %651
    %653 = vrot.lane.b32.xlu0 %v592, 2
    %v654 = vpop.permute.xlu0 %653
    %655 = vrot.lane.b32.xlu0 %v593, 2
    %v656 = vpop.permute.xlu0 %655
    %657 = vrot.lane.b32.xlu0 %v594, 2
    %v658 = vpop.permute.xlu0 %657
    %659 = vrot.lane.b32.xlu0 %v595, 2
    %v660 = vpop.permute.xlu0 %659
    %661 = vrot.lane.b32.xlu0 %v596, 2
    %v662 = vpop.permute.xlu0 %661
    %663 = vrot.lane.b32.xlu0 %v597, 2
    %v664 = vpop.permute.xlu0 %663
    %665 = vrot.lane.b32.xlu0 %v598, 2
    %v666 = vpop.permute.xlu0 %665
    %667 = vrot.lane.b32.xlu0 %v599, 2
    %v668 = vpop.permute.xlu0 %667
    %669 = vrot.lane.b32.xlu0 %v600, 2
    %v670 = vpop.permute.xlu0 %669
    %671 = vrot.lane.b32.xlu0 %v601, 2
    %v672 = vpop.permute.xlu0 %671
    %673 = vrot.lane.b32.xlu0 %v602, 2
    %v674 = vpop.permute.xlu0 %673
    %v699 = vadd.f32 %v459, %v628
    %v700 = vadd.f32 %v460, %v630
    %v701 = vadd.f32 %v461, %v632
    %v702 = vadd.f32 %v462, %v634
    %v703 = vadd.f32 %v463, %v636
    %v704 = vadd.f32 %v464, %v638
    %v705 = vadd.f32 %v465, %v640
    %v706 = vadd.f32 %v466, %v642
    %v707 = vadd.f32 %v467, %v644
    %v708 = vadd.f32 %v468, %v646
    %v709 = vadd.f32 %v469, %v648
    %v710 = vadd.f32 %v470, %v650
    %v711 = vadd.f32 %v471, %v652
    %v712 = vadd.f32 %v472, %v654
    %v713 = vadd.f32 %v473, %v656
    %v714 = vadd.f32 %v474, %v658
    %v715 = vadd.f32 %v475, %v660
    %v716 = vadd.f32 %v476, %v662
    %v717 = vadd.f32 %v477, %v664
    %v718 = vadd.f32 %v478, %v666
    %v719 = vadd.f32 %v479, %v668
    %v720 = vadd.f32 %v480, %v670
    %v721 = vadd.f32 %v481, %v672
    %v722 = vadd.f32 %v482, %v674
    %723 = vrot.lane.b32.xlu0 %v171, 122
    %v724 = vpop.permute.xlu0 %723
    %725 = vrot.lane.b32.xlu0 %v172, 122
    %v726 = vpop.permute.xlu0 %725
    %727 = vrot.lane.b32.xlu0 %v173, 122
    %v728 = vpop.permute.xlu0 %727
    %729 = vrot.lane.b32.xlu0 %v174, 122
    %v730 = vpop.permute.xlu0 %729
    %731 = vrot.lane.b32.xlu0 %v175, 122
    %v732 = vpop.permute.xlu0 %731
    %733 = vrot.lane.b32.xlu0 %v176, 122
    %v734 = vpop.permute.xlu0 %733
    %735 = vrot.lane.b32.xlu0 %v177, 122
    %v736 = vpop.permute.xlu0 %735
    %737 = vrot.lane.b32.xlu0 %v178, 122
    %v738 = vpop.permute.xlu0 %737
    %739 = vrot.lane.b32.xlu0 %v179, 122
    %v740 = vpop.permute.xlu0 %739
    %741 = vrot.lane.b32.xlu0 %v180, 122
    %v742 = vpop.permute.xlu0 %741
    %743 = vrot.lane.b32.xlu0 %v181, 122
    %v744 = vpop.permute.xlu0 %743
    %745 = vrot.lane.b32.xlu0 %v182, 122
    %v746 = vpop.permute.xlu0 %745
    %747 = vrot.lane.b32.xlu0 %v183, 122
    %v748 = vpop.permute.xlu0 %747
    %749 = vrot.lane.b32.xlu0 %v184, 122
    %v750 = vpop.permute.xlu0 %749
    %751 = vrot.lane.b32.xlu0 %v185, 122
    %v752 = vpop.permute.xlu0 %751
    %753 = vrot.lane.b32.xlu0 %v186, 122
    %v754 = vpop.permute.xlu0 %753
    %755 = vrot.lane.b32.xlu0 %v187, 122
    %v756 = vpop.permute.xlu0 %755
    %757 = vrot.lane.b32.xlu0 %v188, 122
    %v758 = vpop.permute.xlu0 %757
    %759 = vrot.lane.b32.xlu0 %v189, 122
    %v760 = vpop.permute.xlu0 %759
    %761 = vrot.lane.b32.xlu0 %v190, 122
    %v762 = vpop.permute.xlu0 %761
    %763 = vrot.lane.b32.xlu0 %v191, 122
    %v764 = vpop.permute.xlu0 %763
    %765 = vrot.lane.b32.xlu0 %v192, 122
    %v766 = vpop.permute.xlu0 %765
    %767 = vrot.lane.b32.xlu0 %v193, 122
    %v768 = vpop.permute.xlu0 %767
    %769 = vrot.lane.b32.xlu0 %v194, 122
    %v770 = vpop.permute.xlu0 %769
    %v795 = vadd.f32 %v171, %v724
    %v796 = vadd.f32 %v172, %v726
    %v797 = vadd.f32 %v173, %v728
    %v798 = vadd.f32 %v174, %v730
    %v799 = vadd.f32 %v175, %v732
    %v800 = vadd.f32 %v176, %v734
    %v801 = vadd.f32 %v177, %v736
    %v802 = vadd.f32 %v178, %v738
    %v803 = vadd.f32 %v179, %v740
    %v804 = vadd.f32 %v180, %v742
    %v805 = vadd.f32 %v181, %v744
    %v806 = vadd.f32 %v182, %v746
    %v807 = vadd.f32 %v183, %v748
    %v808 = vadd.f32 %v184, %v750
    %v809 = vadd.f32 %v185, %v752
    %v810 = vadd.f32 %v186, %v754
    %v811 = vadd.f32 %v187, %v756
    %v812 = vadd.f32 %v188, %v758
    %v813 = vadd.f32 %v189, %v760
    %v814 = vadd.f32 %v190, %v762
    %v815 = vadd.f32 %v191, %v764
    %v816 = vadd.f32 %v192, %v766
    %v817 = vadd.f32 %v193, %v768
    %v818 = vadd.f32 %v194, %v770
    %v819 = vmul.f32 %v795, 0.0044318615
    %v820 = vmul.f32 %v796, 0.0044318615
    %v821 = vmul.f32 %v797, 0.0044318615
    %v822 = vmul.f32 %v798, 0.0044318615
    %v823 = vmul.f32 %v799, 0.0044318615
    %v824 = vmul.f32 %v800, 0.0044318615
    %v825 = vmul.f32 %v801, 0.0044318615
    %v826 = vmul.f32 %v802, 0.0044318615
    %v827 = vmul.f32 %v803, 0.0044318615
    %v828 = vmul.f32 %v804, 0.0044318615
    %v829 = vmul.f32 %v805, 0.0044318615
    %v830 = vmul.f32 %v806, 0.0044318615
    %v831 = vmul.f32 %v807, 0.0044318615
    %v832 = vmul.f32 %v808, 0.0044318615
    %v833 = vmul.f32 %v809, 0.0044318615
    %v834 = vmul.f32 %v810, 0.0044318615
    %v835 = vmul.f32 %v811, 0.0044318615
    %v836 = vmul.f32 %v812, 0.0044318615
    %v837 = vmul.f32 %v813, 0.0044318615
    %v838 = vmul.f32 %v814, 0.0044318615
    %v839 = vmul.f32 %v815, 0.0044318615
    %v840 = vmul.f32 %v816, 0.0044318615
    %v841 = vmul.f32 %v817, 0.0044318615
    %v842 = vmul.f32 %v818, 0.0044318615
    %867 = vrot.lane.b32.xlu0 %v819, 3
    %v868 = vpop.permute.xlu0 %867
    %869 = vrot.lane.b32.xlu0 %v820, 3
    %v870 = vpop.permute.xlu0 %869
    %871 = vrot.lane.b32.xlu0 %v821, 3
    %v872 = vpop.permute.xlu0 %871
    %873 = vrot.lane.b32.xlu0 %v822, 3
    %v874 = vpop.permute.xlu0 %873
    %875 = vrot.lane.b32.xlu0 %v823, 3
    %v876 = vpop.permute.xlu0 %875
    %877 = vrot.lane.b32.xlu0 %v824, 3
    %v878 = vpop.permute.xlu0 %877
    %879 = vrot.lane.b32.xlu0 %v825, 3
    %v880 = vpop.permute.xlu0 %879
    %881 = vrot.lane.b32.xlu0 %v826, 3
    %v882 = vpop.permute.xlu0 %881
    %883 = vrot.lane.b32.xlu0 %v827, 3
    %v884 = vpop.permute.xlu0 %883
    %885 = vrot.lane.b32.xlu0 %v828, 3
    %v886 = vpop.permute.xlu0 %885
    %887 = vrot.lane.b32.xlu0 %v829, 3
    %v888 = vpop.permute.xlu0 %887
    %889 = vrot.lane.b32.xlu0 %v830, 3
    %v890 = vpop.permute.xlu0 %889
    %891 = vrot.lane.b32.xlu0 %v831, 3
    %v892 = vpop.permute.xlu0 %891
    %893 = vrot.lane.b32.xlu0 %v832, 3
    %v894 = vpop.permute.xlu0 %893
    %895 = vrot.lane.b32.xlu0 %v833, 3
    %v896 = vpop.permute.xlu0 %895
    %897 = vrot.lane.b32.xlu0 %v834, 3
    %v898 = vpop.permute.xlu0 %897
    %899 = vrot.lane.b32.xlu0 %v835, 3
    %v900 = vpop.permute.xlu0 %899
    %901 = vrot.lane.b32.xlu0 %v836, 3
    %v902 = vpop.permute.xlu0 %901
    %903 = vrot.lane.b32.xlu0 %v837, 3
    %v904 = vpop.permute.xlu0 %903
    %905 = vrot.lane.b32.xlu0 %v838, 3
    %v906 = vpop.permute.xlu0 %905
    %907 = vrot.lane.b32.xlu0 %v839, 3
    %v908 = vpop.permute.xlu0 %907
    %909 = vrot.lane.b32.xlu0 %v840, 3
    %v910 = vpop.permute.xlu0 %909
    %911 = vrot.lane.b32.xlu0 %v841, 3
    %v912 = vpop.permute.xlu0 %911
    %913 = vrot.lane.b32.xlu0 %v842, 3
    %v914 = vpop.permute.xlu0 %913
    %v939 = vadd.f32 %v699, %v868
    %v940 = vadd.f32 %v700, %v870
    %v941 = vadd.f32 %v701, %v872
    %v942 = vadd.f32 %v702, %v874
    %v943 = vadd.f32 %v703, %v876
    %v944 = vadd.f32 %v704, %v878
    %v945 = vadd.f32 %v705, %v880
    %v946 = vadd.f32 %v706, %v882
    %v947 = vadd.f32 %v707, %v884
    %v948 = vadd.f32 %v708, %v886
    %v949 = vadd.f32 %v709, %v888
    %v950 = vadd.f32 %v710, %v890
    %v951 = vadd.f32 %v711, %v892
    %v952 = vadd.f32 %v712, %v894
    %v953 = vadd.f32 %v713, %v896
    %v954 = vadd.f32 %v714, %v898
    %v955 = vadd.f32 %v715, %v900
    %v956 = vadd.f32 %v716, %v902
    %v957 = vadd.f32 %v717, %v904
    %v958 = vadd.f32 %v718, %v906
    %v959 = vadd.f32 %v719, %v908
    %v960 = vadd.f32 %v720, %v910
    %v961 = vadd.f32 %v721, %v912
    %v962 = vadd.f32 %v722, %v914
    %963 = vrot.lane.b32.xlu0 %v171, 120
    %v964 = vpop.permute.xlu0 %963
    %965 = vrot.lane.b32.xlu0 %v172, 120
    %v966 = vpop.permute.xlu0 %965
    %967 = vrot.lane.b32.xlu0 %v173, 120
    %v968 = vpop.permute.xlu0 %967
    %969 = vrot.lane.b32.xlu0 %v174, 120
    %v970 = vpop.permute.xlu0 %969
    %971 = vrot.lane.b32.xlu0 %v175, 120
    %v972 = vpop.permute.xlu0 %971
    %973 = vrot.lane.b32.xlu0 %v176, 120
    %v974 = vpop.permute.xlu0 %973
    %975 = vrot.lane.b32.xlu0 %v177, 120
    %v976 = vpop.permute.xlu0 %975
    %977 = vrot.lane.b32.xlu0 %v178, 120
    %v978 = vpop.permute.xlu0 %977
    %979 = vrot.lane.b32.xlu0 %v179, 120
    %v980 = vpop.permute.xlu0 %979
    %981 = vrot.lane.b32.xlu0 %v180, 120
    %v982 = vpop.permute.xlu0 %981
    %983 = vrot.lane.b32.xlu0 %v181, 120
    %v984 = vpop.permute.xlu0 %983
    %985 = vrot.lane.b32.xlu0 %v182, 120
    %v986 = vpop.permute.xlu0 %985
    %987 = vrot.lane.b32.xlu0 %v183, 120
    %v988 = vpop.permute.xlu0 %987
    %989 = vrot.lane.b32.xlu0 %v184, 120
    %v990 = vpop.permute.xlu0 %989
    %991 = vrot.lane.b32.xlu0 %v185, 120
    %v992 = vpop.permute.xlu0 %991
    %993 = vrot.lane.b32.xlu0 %v186, 120
    %v994 = vpop.permute.xlu0 %993
    %995 = vrot.lane.b32.xlu0 %v187, 120
    %v996 = vpop.permute.xlu0 %995
    %997 = vrot.lane.b32.xlu0 %v188, 120
    %v998 = vpop.permute.xlu0 %997
    %999 = vrot.lane.b32.xlu0 %v189, 120
    %v1000 = vpop.permute.xlu0 %999
    %1001 = vrot.lane.b32.xlu0 %v190, 120
    %v1002 = vpop.permute.xlu0 %1001
    %1003 = vrot.lane.b32.xlu0 %v191, 120
    %v1004 = vpop.permute.xlu0 %1003
    %1005 = vrot.lane.b32.xlu0 %v192, 120
    %v1006 = vpop.permute.xlu0 %1005
    %1007 = vrot.lane.b32.xlu0 %v193, 120
    %v1008 = vpop.permute.xlu0 %1007
    %1009 = vrot.lane.b32.xlu0 %v194, 120
    %v1010 = vpop.permute.xlu0 %1009
    %v1035 = vadd.f32 %v171, %v964
    %v1036 = vadd.f32 %v172, %v966
    %v1037 = vadd.f32 %v173, %v968
    %v1038 = vadd.f32 %v174, %v970
    %v1039 = vadd.f32 %v175, %v972
    %v1040 = vadd.f32 %v176, %v974
    %v1041 = vadd.f32 %v177, %v976
    %v1042 = vadd.f32 %v178, %v978
    %v1043 = vadd.f32 %v179, %v980
    %v1044 = vadd.f32 %v180, %v982
    %v1045 = vadd.f32 %v181, %v984
    %v1046 = vadd.f32 %v182, %v986
    %v1047 = vadd.f32 %v183, %v988
    %v1048 = vadd.f32 %v184, %v990
    %v1049 = vadd.f32 %v185, %v992
    %v1050 = vadd.f32 %v186, %v994
    %v1051 = vadd.f32 %v187, %v996
    %v1052 = vadd.f32 %v188, %v998
    %v1053 = vadd.f32 %v189, %v1000
    %v1054 = vadd.f32 %v190, %v1002
    %v1055 = vadd.f32 %v191, %v1004
    %v1056 = vadd.f32 %v192, %v1006
    %v1057 = vadd.f32 %v193, %v1008
    %v1058 = vadd.f32 %v194, %v1010
    %v1059 = vmul.f32 %v1035, 0.00013383062
    %v1060 = vmul.f32 %v1036, 0.00013383062
    %v1061 = vmul.f32 %v1037, 0.00013383062
    %v1062 = vmul.f32 %v1038, 0.00013383062
    %v1063 = vmul.f32 %v1039, 0.00013383062
    %v1064 = vmul.f32 %v1040, 0.00013383062
    %v1065 = vmul.f32 %v1041, 0.00013383062
    %v1066 = vmul.f32 %v1042, 0.00013383062
    %v1067 = vmul.f32 %v1043, 0.00013383062
    %v1068 = vmul.f32 %v1044, 0.00013383062
    %v1069 = vmul.f32 %v1045, 0.00013383062
    %v1070 = vmul.f32 %v1046, 0.00013383062
    %v1071 = vmul.f32 %v1047, 0.00013383062
    %v1072 = vmul.f32 %v1048, 0.00013383062
    %v1073 = vmul.f32 %v1049, 0.00013383062
    %v1074 = vmul.f32 %v1050, 0.00013383062
    %v1075 = vmul.f32 %v1051, 0.00013383062
    %v1076 = vmul.f32 %v1052, 0.00013383062
    %v1077 = vmul.f32 %v1053, 0.00013383062
    %v1078 = vmul.f32 %v1054, 0.00013383062
    %v1079 = vmul.f32 %v1055, 0.00013383062
    %v1080 = vmul.f32 %v1056, 0.00013383062
    %v1081 = vmul.f32 %v1057, 0.00013383062
    %v1082 = vmul.f32 %v1058, 0.00013383062
    %1107 = vrot.lane.b32.xlu0 %v1059, 4
    %v1108 = vpop.permute.xlu0 %1107
    %1109 = vrot.lane.b32.xlu0 %v1060, 4
    %v1110 = vpop.permute.xlu0 %1109
    %1111 = vrot.lane.b32.xlu0 %v1061, 4
    %v1112 = vpop.permute.xlu0 %1111
    %1113 = vrot.lane.b32.xlu0 %v1062, 4
    %v1114 = vpop.permute.xlu0 %1113
    %1115 = vrot.lane.b32.xlu0 %v1063, 4
    %v1116 = vpop.permute.xlu0 %1115
    %1117 = vrot.lane.b32.xlu0 %v1064, 4
    %v1118 = vpop.permute.xlu0 %1117
    %1119 = vrot.lane.b32.xlu0 %v1065, 4
    %v1120 = vpop.permute.xlu0 %1119
    %1121 = vrot.lane.b32.xlu0 %v1066, 4
    %v1122 = vpop.permute.xlu0 %1121
    %1123 = vrot.lane.b32.xlu0 %v1067, 4
    %v1124 = vpop.permute.xlu0 %1123
    %1125 = vrot.lane.b32.xlu0 %v1068, 4
    %v1126 = vpop.permute.xlu0 %1125
    %1127 = vrot.lane.b32.xlu0 %v1069, 4
    %v1128 = vpop.permute.xlu0 %1127
    %1129 = vrot.lane.b32.xlu0 %v1070, 4
    %v1130 = vpop.permute.xlu0 %1129
    %1131 = vrot.lane.b32.xlu0 %v1071, 4
    %v1132 = vpop.permute.xlu0 %1131
    %1133 = vrot.lane.b32.xlu0 %v1072, 4
    %v1134 = vpop.permute.xlu0 %1133
    %1135 = vrot.lane.b32.xlu0 %v1073, 4
    %v1136 = vpop.permute.xlu0 %1135
    %1137 = vrot.lane.b32.xlu0 %v1074, 4
    %v1138 = vpop.permute.xlu0 %1137
    %1139 = vrot.lane.b32.xlu0 %v1075, 4
    %v1140 = vpop.permute.xlu0 %1139
    %1141 = vrot.lane.b32.xlu0 %v1076, 4
    %v1142 = vpop.permute.xlu0 %1141
    %1143 = vrot.lane.b32.xlu0 %v1077, 4
    %v1144 = vpop.permute.xlu0 %1143
    %1145 = vrot.lane.b32.xlu0 %v1078, 4
    %v1146 = vpop.permute.xlu0 %1145
    %1147 = vrot.lane.b32.xlu0 %v1079, 4
    %v1148 = vpop.permute.xlu0 %1147
    %1149 = vrot.lane.b32.xlu0 %v1080, 4
    %v1150 = vpop.permute.xlu0 %1149
    %1151 = vrot.lane.b32.xlu0 %v1081, 4
    %v1152 = vpop.permute.xlu0 %1151
    %1153 = vrot.lane.b32.xlu0 %v1082, 4
    %v1154 = vpop.permute.xlu0 %1153
    %v1179 = vadd.f32 %v939, %v1108
    %v1180 = vadd.f32 %v940, %v1110
    %v1181 = vadd.f32 %v941, %v1112
    %v1182 = vadd.f32 %v942, %v1114
    %v1183 = vadd.f32 %v943, %v1116
    %v1184 = vadd.f32 %v944, %v1118
    %v1185 = vadd.f32 %v945, %v1120
    %v1186 = vadd.f32 %v946, %v1122
    %v1187 = vadd.f32 %v947, %v1124
    %v1188 = vadd.f32 %v948, %v1126
    %v1189 = vadd.f32 %v949, %v1128
    %v1190 = vadd.f32 %v950, %v1130
    %v1191 = vadd.f32 %v951, %v1132
    %v1192 = vadd.f32 %v952, %v1134
    %v1193 = vadd.f32 %v953, %v1136
    %v1194 = vadd.f32 %v954, %v1138
    %v1195 = vadd.f32 %v955, %v1140
    %v1196 = vadd.f32 %v956, %v1142
    %v1197 = vadd.f32 %v957, %v1144
    %v1198 = vadd.f32 %v958, %v1146
    %v1199 = vadd.f32 %v959, %v1148
    %v1200 = vadd.f32 %v960, %v1150
    %v1201 = vadd.f32 %v961, %v1152
    %v1202 = vadd.f32 %v962, %v1154
    %v1203 = vmul.f32 %v1179, 0.39894348
    %v1204 = vmul.f32 %v1180, 0.39894348
    %v1205 = vmul.f32 %v1181, 0.39894348
    %v1206 = vmul.f32 %v1182, 0.39894348
    %v1207 = vmul.f32 %v1183, 0.39894348
    %v1208 = vmul.f32 %v1184, 0.39894348
    %v1209 = vmul.f32 %v1185, 0.39894348
    %v1210 = vmul.f32 %v1186, 0.39894348
    %v1211 = vmul.f32 %v1187, 0.39894348
    %v1212 = vmul.f32 %v1188, 0.39894348
    %v1213 = vmul.f32 %v1189, 0.39894348
    %v1214 = vmul.f32 %v1190, 0.39894348
    %v1215 = vmul.f32 %v1191, 0.39894348
    %v1216 = vmul.f32 %v1192, 0.39894348
    %v1217 = vmul.f32 %v1193, 0.39894348
    %v1218 = vmul.f32 %v1194, 0.39894348
    %v1219 = vmul.f32 %v1195, 0.39894348
    %v1220 = vmul.f32 %v1196, 0.39894348
    %v1221 = vmul.f32 %v1197, 0.39894348
    %v1222 = vmul.f32 %v1198, 0.39894348
    %v1223 = vmul.f32 %v1199, 0.39894348
    %v1224 = vmul.f32 %v1200, 0.39894348
    %v1225 = vmul.f32 %v1201, 0.39894348
    %v1226 = vmul.f32 %v1202, 0.39894348
    %vm1251 = vcmask 1045504
    %v1252 = vrot.slane %v1179, 2
    %v1253 = vrot.slane %v1180, 2
    %v1254 = vsel %vm1251, %v1252, %v1253
    %v1255 = vrot.slane %v1181, 2
    %v1256 = vsel %vm1251, %v1253, %v1255
    %v1257 = vrot.slane %v1182, 2
    %v1258 = vrot.slane %v1183, 2
    %v1259 = vsel %vm1251, %v1257, %v1258
    %v1260 = vrot.slane %v1184, 2
    %v1261 = vsel %vm1251, %v1258, %v1260
    %v1262 = vrot.slane %v1185, 2
    %v1263 = vrot.slane %v1186, 2
    %v1264 = vsel %vm1251, %v1262, %v1263
    %v1265 = vrot.slane %v1187, 2
    %v1266 = vsel %vm1251, %v1263, %v1265
    %v1267 = vrot.slane %v1188, 2
    %v1268 = vrot.slane %v1189, 2
    %v1269 = vsel %vm1251, %v1267, %v1268
    %v1270 = vrot.slane %v1190, 2
    %v1271 = vsel %vm1251, %v1268, %v1270
    %v1272 = vrot.slane %v1191, 2
    %v1273 = vrot.slane %v1192, 2
    %v1274 = vsel %vm1251, %v1272, %v1273
    %v1275 = vrot.slane %v1193, 2
    %v1276 = vsel %vm1251, %v1273, %v1275
    %v1277 = vrot.slane %v1194, 2
    %v1278 = vrot.slane %v1195, 2
    %v1279 = vsel %vm1251, %v1277, %v1278
    %v1280 = vrot.slane %v1196, 2
    %v1281 = vsel %vm1251, %v1278, %v1280
    %v1282 = vrot.slane %v1197, 2
    %v1283 = vrot.slane %v1198, 2
    %v1284 = vsel %vm1251, %v1282, %v1283
    %v1285 = vrot.slane %v1199, 2
    %v1286 = vsel %vm1251, %v1283, %v1285
    %v1287 = vrot.slane %v1200, 2
    %v1288 = vrot.slane %v1201, 2
    %v1289 = vsel %vm1251, %v1287, %v1288
    %v1290 = vrot.slane %v1202, 2
    %v1291 = vsel %vm1251, %v1288, %v1290
    %v1316 = vadd.f32 %v1179, %v1254
    %v1317 = vadd.f32 %v1180, %v1256
    %v1318 = vadd.f32 %v1181, %v1255
    %v1319 = vadd.f32 %v1182, %v1259
    %v1320 = vadd.f32 %v1183, %v1261
    %v1321 = vadd.f32 %v1184, %v1260
    %v1322 = vadd.f32 %v1185, %v1264
    %v1323 = vadd.f32 %v1186, %v1266
    %v1324 = vadd.f32 %v1187, %v1265
    %v1325 = vadd.f32 %v1188, %v1269
    %v1326 = vadd.f32 %v1189, %v1271
    %v1327 = vadd.f32 %v1190, %v1270
    %v1328 = vadd.f32 %v1191, %v1274
    %v1329 = vadd.f32 %v1192, %v1276
    %v1330 = vadd.f32 %v1193, %v1275
    %v1331 = vadd.f32 %v1194, %v1279
    %v1332 = vadd.f32 %v1195, %v1281
    %v1333 = vadd.f32 %v1196, %v1280
    %v1334 = vadd.f32 %v1197, %v1284
    %v1335 = vadd.f32 %v1198, %v1286
    %v1336 = vadd.f32 %v1199, %v1285
    %v1337 = vadd.f32 %v1200, %v1289
    %v1338 = vadd.f32 %v1201, %v1291
    %v1339 = vadd.f32 %v1202, %v1290
    %v1340 = vmul.f32 %v1316, 0.24197145
    %v1341 = vmul.f32 %v1317, 0.24197145
    %v1342 = vmul.f32 %v1318, 0.24197145
    %v1343 = vmul.f32 %v1319, 0.24197145
    %v1344 = vmul.f32 %v1320, 0.24197145
    %v1345 = vmul.f32 %v1321, 0.24197145
    %v1346 = vmul.f32 %v1322, 0.24197145
    %v1347 = vmul.f32 %v1323, 0.24197145
    %v1348 = vmul.f32 %v1324, 0.24197145
    %v1349 = vmul.f32 %v1325, 0.24197145
    %v1350 = vmul.f32 %v1326, 0.24197145
    %v1351 = vmul.f32 %v1327, 0.24197145
    %v1352 = vmul.f32 %v1328, 0.24197145
    %v1353 = vmul.f32 %v1329, 0.24197145
    %v1354 = vmul.f32 %v1330, 0.24197145
    %v1355 = vmul.f32 %v1331, 0.24197145
    %v1356 = vmul.f32 %v1332, 0.24197145
    %v1357 = vmul.f32 %v1333, 0.24197145
    %v1358 = vmul.f32 %v1334, 0.24197145
    %v1359 = vmul.f32 %v1335, 0.24197145
    %v1360 = vmul.f32 %v1336, 0.24197145
    %v1361 = vmul.f32 %v1337, 0.24197145
    %v1362 = vmul.f32 %v1338, 0.24197145
    %v1363 = vmul.f32 %v1339, 0.24197145
    %vm1388 = vcmask 1040384
    %v1389 = vrot.slane %v1340, 7
    %v1390 = vrot.slane %v1341, 7
    %v1391 = vsel %vm1388, %v1389, %v1390
    %v1392 = vrot.slane %v1342, 7
    %v1393 = vsel %vm1388, %v1390, %v1392
    %v1394 = vrot.slane %v1343, 7
    %v1395 = vrot.slane %v1344, 7
    %v1396 = vsel %vm1388, %v1394, %v1395
    %v1397 = vrot.slane %v1345, 7
    %v1398 = vsel %vm1388, %v1395, %v1397
    %v1399 = vrot.slane %v1346, 7
    %v1400 = vrot.slane %v1347, 7
    %v1401 = vsel %vm1388, %v1399, %v1400
    %v1402 = vrot.slane %v1348, 7
    %v1403 = vsel %vm1388, %v1400, %v1402
    %v1404 = vrot.slane %v1349, 7
    %v1405 = vrot.slane %v1350, 7
    %v1406 = vsel %vm1388, %v1404, %v1405
    %v1407 = vrot.slane %v1351, 7
    %v1408 = vsel %vm1388, %v1405, %v1407
    %v1409 = vrot.slane %v1352, 7
    %v1410 = vrot.slane %v1353, 7
    %v1411 = vsel %vm1388, %v1409, %v1410
    %v1412 = vrot.slane %v1354, 7
    %v1413 = vsel %vm1388, %v1410, %v1412
    %v1414 = vrot.slane %v1355, 7
    %v1415 = vrot.slane %v1356, 7
    %v1416 = vsel %vm1388, %v1414, %v1415
    %v1417 = vrot.slane %v1357, 7
    %v1418 = vsel %vm1388, %v1415, %v1417
    %v1419 = vrot.slane %v1358, 7
    %v1420 = vrot.slane %v1359, 7
    %v1421 = vsel %vm1388, %v1419, %v1420
    %v1422 = vrot.slane %v1360, 7
    %v1423 = vsel %vm1388, %v1420, %v1422
    %v1424 = vrot.slane %v1361, 7
    %v1425 = vrot.slane %v1362, 7
    %v1426 = vsel %vm1388, %v1424, %v1425
    %v1427 = vrot.slane %v1363, 7
    %v1428 = vsel %vm1388, %v1425, %v1427
    %v1453 = vadd.f32 %v1203, %v1389
    %v1454 = vadd.f32 %v1204, %v1391
    %v1455 = vadd.f32 %v1205, %v1393
    %v1456 = vadd.f32 %v1206, %v1394
    %v1457 = vadd.f32 %v1207, %v1396
    %v1458 = vadd.f32 %v1208, %v1398
    %v1459 = vadd.f32 %v1209, %v1399
    %v1460 = vadd.f32 %v1210, %v1401
    %v1461 = vadd.f32 %v1211, %v1403
    %v1462 = vadd.f32 %v1212, %v1404
    %v1463 = vadd.f32 %v1213, %v1406
    %v1464 = vadd.f32 %v1214, %v1408
    %v1465 = vadd.f32 %v1215, %v1409
    %v1466 = vadd.f32 %v1216, %v1411
    %v1467 = vadd.f32 %v1217, %v1413
    %v1468 = vadd.f32 %v1218, %v1414
    %v1469 = vadd.f32 %v1219, %v1416
    %v1470 = vadd.f32 %v1220, %v1418
    %v1471 = vadd.f32 %v1221, %v1419
    %v1472 = vadd.f32 %v1222, %v1421
    %v1473 = vadd.f32 %v1223, %v1423
    %v1474 = vadd.f32 %v1224, %v1424
    %v1475 = vadd.f32 %v1225, %v1426
    %v1476 = vadd.f32 %v1226, %v1428
    %vm1477 = vcmask 1043456
    %v1478 = vrot.slane %v1179, 4
    %v1479 = vrot.slane %v1180, 4
    %v1480 = vsel %vm1477, %v1478, %v1479
    %v1481 = vrot.slane %v1181, 4
    %v1482 = vsel %vm1477, %v1479, %v1481
    %v1483 = vrot.slane %v1182, 4
    %v1484 = vrot.slane %v1183, 4
    %v1485 = vsel %vm1477, %v1483, %v1484
    %v1486 = vrot.slane %v1184, 4
    %v1487 = vsel %vm1477, %v1484, %v1486
    %v1488 = vrot.slane %v1185, 4
    %v1489 = vrot.slane %v1186, 4
    %v1490 = vsel %vm1477, %v1488, %v1489
    %v1491 = vrot.slane %v1187, 4
    %v1492 = vsel %vm1477, %v1489, %v1491
    %v1493 = vrot.slane %v1188, 4
    %v1494 = vrot.slane %v1189, 4
    %v1495 = vsel %vm1477, %v1493, %v1494
    %v1496 = vrot.slane %v1190, 4
    %v1497 = vsel %vm1477, %v1494, %v1496
    %v1498 = vrot.slane %v1191, 4
    %v1499 = vrot.slane %v1192, 4
    %v1500 = vsel %vm1477, %v1498, %v1499
    %v1501 = vrot.slane %v1193, 4
    %v1502 = vsel %vm1477, %v1499, %v1501
    %v1503 = vrot.slane %v1194, 4
    %v1504 = vrot.slane %v1195, 4
    %v1505 = vsel %vm1477, %v1503, %v1504
    %v1506 = vrot.slane %v1196, 4
    %v1507 = vsel %vm1477, %v1504, %v1506
    %v1508 = vrot.slane %v1197, 4
    %v1509 = vrot.slane %v1198, 4
    %v1510 = vsel %vm1477, %v1508, %v1509
    %v1511 = vrot.slane %v1199, 4
    %v1512 = vsel %vm1477, %v1509, %v1511
    %v1513 = vrot.slane %v1200, 4
    %v1514 = vrot.slane %v1201, 4
    %v1515 = vsel %vm1477, %v1513, %v1514
    %v1516 = vrot.slane %v1202, 4
    %v1517 = vsel %vm1477, %v1514, %v1516
    %v1542 = vadd.f32 %v1179, %v1480
    %v1543 = vadd.f32 %v1180, %v1482
    %v1544 = vadd.f32 %v1181, %v1481
    %v1545 = vadd.f32 %v1182, %v1485
    %v1546 = vadd.f32 %v1183, %v1487
    %v1547 = vadd.f32 %v1184, %v1486
    %v1548 = vadd.f32 %v1185, %v1490
    %v1549 = vadd.f32 %v1186, %v1492
    %v1550 = vadd.f32 %v1187, %v1491
    %v1551 = vadd.f32 %v1188, %v1495
    %v1552 = vadd.f32 %v1189, %v1497
    %v1553 = vadd.f32 %v1190, %v1496
    %v1554 = vadd.f32 %v1191, %v1500
    %v1555 = vadd.f32 %v1192, %v1502
    %v1556 = vadd.f32 %v1193, %v1501
    %v1557 = vadd.f32 %v1194, %v1505
    %v1558 = vadd.f32 %v1195, %v1507
    %v1559 = vadd.f32 %v1196, %v1506
    %v1560 = vadd.f32 %v1197, %v1510
    %v1561 = vadd.f32 %v1198, %v1512
    %v1562 = vadd.f32 %v1199, %v1511
    %v1563 = vadd.f32 %v1200, %v1515
    %v1564 = vadd.f32 %v1201, %v1517
    %v1565 = vadd.f32 %v1202, %v1516
    %v1566 = vmul.f32 %v1542, 0.053991128
    %v1567 = vmul.f32 %v1543, 0.053991128
    %v1568 = vmul.f32 %v1544, 0.053991128
    %v1569 = vmul.f32 %v1545, 0.053991128
    %v1570 = vmul.f32 %v1546, 0.053991128
    %v1571 = vmul.f32 %v1547, 0.053991128
    %v1572 = vmul.f32 %v1548, 0.053991128
    %v1573 = vmul.f32 %v1549, 0.053991128
    %v1574 = vmul.f32 %v1550, 0.053991128
    %v1575 = vmul.f32 %v1551, 0.053991128
    %v1576 = vmul.f32 %v1552, 0.053991128
    %v1577 = vmul.f32 %v1553, 0.053991128
    %v1578 = vmul.f32 %v1554, 0.053991128
    %v1579 = vmul.f32 %v1555, 0.053991128
    %v1580 = vmul.f32 %v1556, 0.053991128
    %v1581 = vmul.f32 %v1557, 0.053991128
    %v1582 = vmul.f32 %v1558, 0.053991128
    %v1583 = vmul.f32 %v1559, 0.053991128
    %v1584 = vmul.f32 %v1560, 0.053991128
    %v1585 = vmul.f32 %v1561, 0.053991128
    %v1586 = vmul.f32 %v1562, 0.053991128
    %v1587 = vmul.f32 %v1563, 0.053991128
    %v1588 = vmul.f32 %v1564, 0.053991128
    %v1589 = vmul.f32 %v1565, 0.053991128
    %vm1614 = vcmask 1041408
    %v1615 = vrot.slane %v1566, 6
    %v1616 = vrot.slane %v1567, 6
    %v1617 = vsel %vm1614, %v1615, %v1616
    %v1618 = vrot.slane %v1568, 6
    %v1619 = vsel %vm1614, %v1616, %v1618
    %v1620 = vrot.slane %v1569, 6
    %v1621 = vrot.slane %v1570, 6
    %v1622 = vsel %vm1614, %v1620, %v1621
    %v1623 = vrot.slane %v1571, 6
    %v1624 = vsel %vm1614, %v1621, %v1623
    %v1625 = vrot.slane %v1572, 6
    %v1626 = vrot.slane %v1573, 6
    %v1627 = vsel %vm1614, %v1625, %v1626
    %v1628 = vrot.slane %v1574, 6
    %v1629 = vsel %vm1614, %v1626, %v1628
    %v1630 = vrot.slane %v1575, 6
    %v1631 = vrot.slane %v1576, 6
    %v1632 = vsel %vm1614, %v1630, %v1631
    %v1633 = vrot.slane %v1577, 6
    %v1634 = vsel %vm1614, %v1631, %v1633
    %v1635 = vrot.slane %v1578, 6
    %v1636 = vrot.slane %v1579, 6
    %v1637 = vsel %vm1614, %v1635, %v1636
    %v1638 = vrot.slane %v1580, 6
    %v1639 = vsel %vm1614, %v1636, %v1638
    %v1640 = vrot.slane %v1581, 6
    %v1641 = vrot.slane %v1582, 6
    %v1642 = vsel %vm1614, %v1640, %v1641
    %v1643 = vrot.slane %v1583, 6
    %v1644 = vsel %vm1614, %v1641, %v1643
    %v1645 = vrot.slane %v1584, 6
    %v1646 = vrot.slane %v1585, 6
    %v1647 = vsel %vm1614, %v1645, %v1646
    %v1648 = vrot.slane %v1586, 6
    %v1649 = vsel %vm1614, %v1646, %v1648
    %v1650 = vrot.slane %v1587, 6
    %v1651 = vrot.slane %v1588, 6
    %v1652 = vsel %vm1614, %v1650, %v1651
    %v1653 = vrot.slane %v1589, 6
    %v1654 = vsel %vm1614, %v1651, %v1653
    %v1679 = vadd.f32 %v1453, %v1615
    %v1680 = vadd.f32 %v1454, %v1617
    %v1681 = vadd.f32 %v1455, %v1619
    %v1682 = vadd.f32 %v1456, %v1620
    %v1683 = vadd.f32 %v1457, %v1622
    %v1684 = vadd.f32 %v1458, %v1624
    %v1685 = vadd.f32 %v1459, %v1625
    %v1686 = vadd.f32 %v1460, %v1627
    %v1687 = vadd.f32 %v1461, %v1629
    %v1688 = vadd.f32 %v1462, %v1630
    %v1689 = vadd.f32 %v1463, %v1632
    %v1690 = vadd.f32 %v1464, %v1634
    %v1691 = vadd.f32 %v1465, %v1635
    %v1692 = vadd.f32 %v1466, %v1637
    %v1693 = vadd.f32 %v1467, %v1639
    %v1694 = vadd.f32 %v1468, %v1640
    %v1695 = vadd.f32 %v1469, %v1642
    %v1696 = vadd.f32 %v1470, %v1644
    %v1697 = vadd.f32 %v1471, %v1645
    %v1698 = vadd.f32 %v1472, %v1647
    %v1699 = vadd.f32 %v1473, %v1649
    %v1700 = vadd.f32 %v1474, %v1650
    %v1701 = vadd.f32 %v1475, %v1652
    %v1702 = vadd.f32 %v1476, %v1654
    %v1703 = vrot.slane %v1179, 6
    %v1704 = vrot.slane %v1180, 6
    %v1705 = vsel %vm1614, %v1703, %v1704
    %v1706 = vrot.slane %v1181, 6
    %v1707 = vsel %vm1614, %v1704, %v1706
    %v1708 = vrot.slane %v1182, 6
    %v1709 = vrot.slane %v1183, 6
    %v1710 = vsel %vm1614, %v1708, %v1709
    %v1711 = vrot.slane %v1184, 6
    %v1712 = vsel %vm1614, %v1709, %v1711
    %v1713 = vrot.slane %v1185, 6
    %v1714 = vrot.slane %v1186, 6
    %v1715 = vsel %vm1614, %v1713, %v1714
    %v1716 = vrot.slane %v1187, 6
    %v1717 = vsel %vm1614, %v1714, %v1716
    %v1718 = vrot.slane %v1188, 6
    %v1719 = vrot.slane %v1189, 6
    %v1720 = vsel %vm1614, %v1718, %v1719
    %v1721 = vrot.slane %v1190, 6
    %v1722 = vsel %vm1614, %v1719, %v1721
    %v1723 = vrot.slane %v1191, 6
    %v1724 = vrot.slane %v1192, 6
    %v1725 = vsel %vm1614, %v1723, %v1724
    %v1726 = vrot.slane %v1193, 6
    %v1727 = vsel %vm1614, %v1724, %v1726
    %v1728 = vrot.slane %v1194, 6
    %v1729 = vrot.slane %v1195, 6
    %v1730 = vsel %vm1614, %v1728, %v1729
    %v1731 = vrot.slane %v1196, 6
    %v1732 = vsel %vm1614, %v1729, %v1731
    %v1733 = vrot.slane %v1197, 6
    %v1734 = vrot.slane %v1198, 6
    %v1735 = vsel %vm1614, %v1733, %v1734
    %v1736 = vrot.slane %v1199, 6
    %v1737 = vsel %vm1614, %v1734, %v1736
    %v1738 = vrot.slane %v1200, 6
    %v1739 = vrot.slane %v1201, 6
    %v1740 = vsel %vm1614, %v1738, %v1739
    %v1741 = vrot.slane %v1202, 6
    %v1742 = vsel %vm1614, %v1739, %v1741
    %v1767 = vadd.f32 %v1179, %v1705
    %v1768 = vadd.f32 %v1180, %v1707
    %v1769 = vadd.f32 %v1181, %v1706
    %v1770 = vadd.f32 %v1182, %v1710
    %v1771 = vadd.f32 %v1183, %v1712
    %v1772 = vadd.f32 %v1184, %v1711
    %v1773 = vadd.f32 %v1185, %v1715
    %v1774 = vadd.f32 %v1186, %v1717
    %v1775 = vadd.f32 %v1187, %v1716
    %v1776 = vadd.f32 %v1188, %v1720
    %v1777 = vadd.f32 %v1189, %v1722
    %v1778 = vadd.f32 %v1190, %v1721
    %v1779 = vadd.f32 %v1191, %v1725
    %v1780 = vadd.f32 %v1192, %v1727
    %v1781 = vadd.f32 %v1193, %v1726
    %v1782 = vadd.f32 %v1194, %v1730
    %v1783 = vadd.f32 %v1195, %v1732
    %v1784 = vadd.f32 %v1196, %v1731
    %v1785 = vadd.f32 %v1197, %v1735
    %v1786 = vadd.f32 %v1198, %v1737
    %v1787 = vadd.f32 %v1199, %v1736
    %v1788 = vadd.f32 %v1200, %v1740
    %v1789 = vadd.f32 %v1201, %v1742
    %v1790 = vadd.f32 %v1202, %v1741
    %v1791 = vmul.f32 %v1767, 0.0044318615
    %v1792 = vmul.f32 %v1768, 0.0044318615
    %v1793 = vmul.f32 %v1769, 0.0044318615
    %v1794 = vmul.f32 %v1770, 0.0044318615
    %v1795 = vmul.f32 %v1771, 0.0044318615
    %v1796 = vmul.f32 %v1772, 0.0044318615
    %v1797 = vmul.f32 %v1773, 0.0044318615
    %v1798 = vmul.f32 %v1774, 0.0044318615
    %v1799 = vmul.f32 %v1775, 0.0044318615
    %v1800 = vmul.f32 %v1776, 0.0044318615
    %v1801 = vmul.f32 %v1777, 0.0044318615
    %v1802 = vmul.f32 %v1778, 0.0044318615
    %v1803 = vmul.f32 %v1779, 0.0044318615
    %v1804 = vmul.f32 %v1780, 0.0044318615
    %v1805 = vmul.f32 %v1781, 0.0044318615
    %v1806 = vmul.f32 %v1782, 0.0044318615
    %v1807 = vmul.f32 %v1783, 0.0044318615
    %v1808 = vmul.f32 %v1784, 0.0044318615
    %v1809 = vmul.f32 %v1785, 0.0044318615
    %v1810 = vmul.f32 %v1786, 0.0044318615
    %v1811 = vmul.f32 %v1787, 0.0044318615
    %v1812 = vmul.f32 %v1788, 0.0044318615
    %v1813 = vmul.f32 %v1789, 0.0044318615
    %v1814 = vmul.f32 %v1790, 0.0044318615
    %vm1839 = vcmask 1042432
    %v1840 = vrot.slane %v1791, 5
    %v1841 = vrot.slane %v1792, 5
    %v1842 = vsel %vm1839, %v1840, %v1841
    %v1843 = vrot.slane %v1793, 5
    %v1844 = vsel %vm1839, %v1841, %v1843
    %v1845 = vrot.slane %v1794, 5
    %v1846 = vrot.slane %v1795, 5
    %v1847 = vsel %vm1839, %v1845, %v1846
    %v1848 = vrot.slane %v1796, 5
    %v1849 = vsel %vm1839, %v1846, %v1848
    %v1850 = vrot.slane %v1797, 5
    %v1851 = vrot.slane %v1798, 5
    %v1852 = vsel %vm1839, %v1850, %v1851
    %v1853 = vrot.slane %v1799, 5
    %v1854 = vsel %vm1839, %v1851, %v1853
    %v1855 = vrot.slane %v1800, 5
    %v1856 = vrot.slane %v1801, 5
    %v1857 = vsel %vm1839, %v1855, %v1856
    %v1858 = vrot.slane %v1802, 5
    %v1859 = vsel %vm1839, %v1856, %v1858
    %v1860 = vrot.slane %v1803, 5
    %v1861 = vrot.slane %v1804, 5
    %v1862 = vsel %vm1839, %v1860, %v1861
    %v1863 = vrot.slane %v1805, 5
    %v1864 = vsel %vm1839, %v1861, %v1863
    %v1865 = vrot.slane %v1806, 5
    %v1866 = vrot.slane %v1807, 5
    %v1867 = vsel %vm1839, %v1865, %v1866
    %v1868 = vrot.slane %v1808, 5
    %v1869 = vsel %vm1839, %v1866, %v1868
    %v1870 = vrot.slane %v1809, 5
    %v1871 = vrot.slane %v1810, 5
    %v1872 = vsel %vm1839, %v1870, %v1871
    %v1873 = vrot.slane %v1811, 5
    %v1874 = vsel %vm1839, %v1871, %v1873
    %v1875 = vrot.slane %v1812, 5
    %v1876 = vrot.slane %v1813, 5
    %v1877 = vsel %vm1839, %v1875, %v1876
    %v1878 = vrot.slane %v1814, 5
    %v1879 = vsel %vm1839, %v1876, %v1878
    %v1904 = vadd.f32 %v1679, %v1840
    %v1905 = vadd.f32 %v1680, %v1842
    %v1906 = vadd.f32 %v1681, %v1844
    %v1907 = vadd.f32 %v1682, %v1845
    %v1908 = vadd.f32 %v1683, %v1847
    %v1909 = vadd.f32 %v1684, %v1849
    %v1910 = vadd.f32 %v1685, %v1850
    %v1911 = vadd.f32 %v1686, %v1852
    %v1912 = vadd.f32 %v1687, %v1854
    %v1913 = vadd.f32 %v1688, %v1855
    %v1914 = vadd.f32 %v1689, %v1857
    %v1915 = vadd.f32 %v1690, %v1859
    %v1916 = vadd.f32 %v1691, %v1860
    %v1917 = vadd.f32 %v1692, %v1862
    %v1918 = vadd.f32 %v1693, %v1864
    %v1919 = vadd.f32 %v1694, %v1865
    %v1920 = vadd.f32 %v1695, %v1867
    %v1921 = vadd.f32 %v1696, %v1869
    %v1922 = vadd.f32 %v1697, %v1870
    %v1923 = vadd.f32 %v1698, %v1872
    %v1924 = vadd.f32 %v1699, %v1874
    %v1925 = vadd.f32 %v1700, %v1875
    %v1926 = vadd.f32 %v1701, %v1877
    %v1927 = vadd.f32 %v1702, %v1879
    %v1928 = vadd.f32 %v1179, %v1180
    %v1929 = vadd.f32 %v1180, %v1181
    %v1930 = vadd.f32 %v1182, %v1183
    %v1931 = vadd.f32 %v1183, %v1184
    %v1932 = vadd.f32 %v1185, %v1186
    %v1933 = vadd.f32 %v1186, %v1187
    %v1934 = vadd.f32 %v1188, %v1189
    %v1935 = vadd.f32 %v1189, %v1190
    %v1936 = vadd.f32 %v1191, %v1192
    %v1937 = vadd.f32 %v1192, %v1193
    %v1938 = vadd.f32 %v1194, %v1195
    %v1939 = vadd.f32 %v1195, %v1196
    %v1940 = vadd.f32 %v1197, %v1198
    %v1941 = vadd.f32 %v1198, %v1199
    %v1942 = vadd.f32 %v1200, %v1201
    %v1943 = vadd.f32 %v1201, %v1202
    %v1944 = vmul.f32 %v1928, 0.00013383062
    %v1945 = vmul.f32 %v1929, 0.00013383062
    %v1946 = vmul.f32 %v1930, 0.00013383062
    %v1947 = vmul.f32 %v1931, 0.00013383062
    %v1948 = vmul.f32 %v1932, 0.00013383062
    %v1949 = vmul.f32 %v1933, 0.00013383062
    %v1950 = vmul.f32 %v1934, 0.00013383062
    %v1951 = vmul.f32 %v1935, 0.00013383062
    %v1952 = vmul.f32 %v1936, 0.00013383062
    %v1953 = vmul.f32 %v1937, 0.00013383062
    %v1954 = vmul.f32 %v1938, 0.00013383062
    %v1955 = vmul.f32 %v1939, 0.00013383062
    %v1956 = vmul.f32 %v1940, 0.00013383062
    %v1957 = vmul.f32 %v1941, 0.00013383062
    %v1958 = vmul.f32 %v1942, 0.00013383062
    %v1959 = vmul.f32 %v1943, 0.00013383062
    %v1976 = vrot.slane %v1944, 4
    %v1977 = vrot.slane %v1945, 4
    %v1978 = vsel %vm1477, %v1976, %v1977
    %v1979 = vrot.slane %v1946, 4
    %v1980 = vrot.slane %v1947, 4
    %v1981 = vsel %vm1477, %v1979, %v1980
    %v1982 = vrot.slane %v1948, 4
    %v1983 = vrot.slane %v1949, 4
    %v1984 = vsel %vm1477, %v1982, %v1983
    %v1985 = vrot.slane %v1950, 4
    %v1986 = vrot.slane %v1951, 4
    %v1987 = vsel %vm1477, %v1985, %v1986
    %v1988 = vrot.slane %v1952, 4
    %v1989 = vrot.slane %v1953, 4
    %v1990 = vsel %vm1477, %v1988, %v1989
    %v1991 = vrot.slane %v1954, 4
    %v1992 = vrot.slane %v1955, 4
    %v1993 = vsel %vm1477, %v1991, %v1992
    %v1994 = vrot.slane %v1956, 4
    %v1995 = vrot.slane %v1957, 4
    %v1996 = vsel %vm1477, %v1994, %v1995
    %v1997 = vrot.slane %v1958, 4
    %v1998 = vrot.slane %v1959, 4
    %v1999 = vsel %vm1477, %v1997, %v1998
    %v2024 = vadd.f32 %v1904, %v1976
    %v2025 = vadd.f32 %v1905, %v1978
    %v2026 = vadd.f32 %v1906, %v1977
    %v2027 = vadd.f32 %v1907, %v1979
    %v2028 = vadd.f32 %v1908, %v1981
    %v2029 = vadd.f32 %v1909, %v1980
    %v2030 = vadd.f32 %v1910, %v1982
    %v2031 = vadd.f32 %v1911, %v1984
    %v2032 = vadd.f32 %v1912, %v1983
    %v2033 = vadd.f32 %v1913, %v1985
    %v2034 = vadd.f32 %v1914, %v1987
    %v2035 = vadd.f32 %v1915, %v1986
    %v2036 = vadd.f32 %v1916, %v1988
    %v2037 = vadd.f32 %v1917, %v1990
    %v2038 = vadd.f32 %v1918, %v1989
    %v2039 = vadd.f32 %v1919, %v1991
    %v2040 = vadd.f32 %v1920, %v1993
    %v2041 = vadd.f32 %v1921, %v1992
    %v2042 = vadd.f32 %v1922, %v1994
    %v2043 = vadd.f32 %v1923, %v1996
    %v2044 = vadd.f32 %v1924, %v1995
    %v2045 = vadd.f32 %v1925, %v1997
    %v2046 = vadd.f32 %v1926, %v1999
    %v2047 = vadd.f32 %v1927, %v1998
    %2072 = vrot.lane.b32.xlu0 %v2024, 124
    %v2073 = vpop.permute.xlu0 %2072
    %2074 = vrot.lane.b32.xlu0 %v2025, 124
    %v2075 = vpop.permute.xlu0 %2074
    %2076 = vrot.lane.b32.xlu0 %v2026, 124
    %v2077 = vpop.permute.xlu0 %2076
    %2078 = vrot.lane.b32.xlu0 %v2027, 124
    %v2079 = vpop.permute.xlu0 %2078
    %2080 = vrot.lane.b32.xlu0 %v2028, 124
    %v2081 = vpop.permute.xlu0 %2080
    %2082 = vrot.lane.b32.xlu0 %v2029, 124
    %v2083 = vpop.permute.xlu0 %2082
    %2084 = vrot.lane.b32.xlu0 %v2030, 124
    %v2085 = vpop.permute.xlu0 %2084
    %2086 = vrot.lane.b32.xlu0 %v2031, 124
    %v2087 = vpop.permute.xlu0 %2086
    %2088 = vrot.lane.b32.xlu0 %v2032, 124
    %v2089 = vpop.permute.xlu0 %2088
    %2090 = vrot.lane.b32.xlu0 %v2033, 124
    %v2091 = vpop.permute.xlu0 %2090
    %2092 = vrot.lane.b32.xlu0 %v2034, 124
    %v2093 = vpop.permute.xlu0 %2092
    %2094 = vrot.lane.b32.xlu0 %v2035, 124
    %v2095 = vpop.permute.xlu0 %2094
    %2096 = vrot.lane.b32.xlu0 %v2036, 124
    %v2097 = vpop.permute.xlu0 %2096
    %2098 = vrot.lane.b32.xlu0 %v2037, 124
    %v2099 = vpop.permute.xlu0 %2098
    %2100 = vrot.lane.b32.xlu0 %v2038, 124
    %v2101 = vpop.permute.xlu0 %2100
    %2102 = vrot.lane.b32.xlu0 %v2039, 124
    %v2103 = vpop.permute.xlu0 %2102
    %2104 = vrot.lane.b32.xlu0 %v2040, 124
    %v2105 = vpop.permute.xlu0 %2104
    %2106 = vrot.lane.b32.xlu0 %v2041, 124
    %v2107 = vpop.permute.xlu0 %2106
    %2108 = vrot.lane.b32.xlu0 %v2042, 124
    %v2109 = vpop.permute.xlu0 %2108
    %2110 = vrot.lane.b32.xlu0 %v2043, 124
    %v2111 = vpop.permute.xlu0 %2110
    %2112 = vrot.lane.b32.xlu0 %v2044, 124
    %v2113 = vpop.permute.xlu0 %2112
    %2114 = vrot.lane.b32.xlu0 %v2045, 124
    %v2115 = vpop.permute.xlu0 %2114
    %2116 = vrot.lane.b32.xlu0 %v2046, 124
    %v2117 = vpop.permute.xlu0 %2116
    %2118 = vrot.lane.b32.xlu0 %v2047, 124
    %v2119 = vpop.permute.xlu0 %2118
    %vm2144 = vcmask 130052
    %2145 = vst.msk [vmem:[#allocation6 - $0x4] sm:$0xf0] %vm2144, %v2073
    %vm2146 = vcmask 130048
    %2147 = vst.msk [vmem:[#allocation6 + $0x4] sm:$0xff] %vm2146, %v2075
    %vm2148 = vcmask 125952
    %2149 = vst.msk [vmem:[#allocation6 + $0xc] sm:$0xf] %vm2148, %v2077
    %2150 = vst.msk [vmem:[#allocation6 + $0xc] sm:$0xf0] %vm2144, %v2079
    %2151 = vst.msk [vmem:[#allocation6 + $0x14] sm:$0xff] %vm2146, %v2081
    %2152 = vst.msk [vmem:[#allocation6 + $0x1c] sm:$0xf] %vm2148, %v2083
    %2153 = vst.msk [vmem:[#allocation6 + $0x1c] sm:$0xf0] %vm2144, %v2085
    %2154 = vst.msk [vmem:[#allocation6 + $0x24] sm:$0xff] %vm2146, %v2087
    %2155 = vst.msk [vmem:[#allocation6 + $0x2c] sm:$0xf] %vm2148, %v2089
    %2156 = vst.msk [vmem:[#allocation6 + $0x2c] sm:$0xf0] %vm2144, %v2091
    %2157 = vst.msk [vmem:[#allocation6 + $0x34] sm:$0xff] %vm2146, %v2093
    %2158 = vst.msk [vmem:[#allocation6 + $0x3c] sm:$0xf] %vm2148, %v2095
    %2159 = vst.msk [vmem:[#allocation6 + $0x3c] sm:$0xf0] %vm2144, %v2097
    %2160 = vst.msk [vmem:[#allocation6 + $0x44] sm:$0xff] %vm2146, %v2099
    %2161 = vst.msk [vmem:[#allocation6 + $0x4c] sm:$0xf] %vm2148, %v2101
    %2162 = vst.msk [vmem:[#allocation6 + $0x4c] sm:$0xf0] %vm2144, %v2103
    %2163 = vst.msk [vmem:[#allocation6 + $0x54] sm:$0xff] %vm2146, %v2105
    %2164 = vst.msk [vmem:[#allocation6 + $0x5c] sm:$0xf] %vm2148, %v2107
    %2165 = vst.msk [vmem:[#allocation6 + $0x5c] sm:$0xf0] %vm2144, %v2109
    %2166 = vst.msk [vmem:[#allocation6 + $0x64] sm:$0xff] %vm2146, %v2111
    %2167 = vst.msk [vmem:[#allocation6 + $0x6c] sm:$0xf] %vm2148, %v2113
    %2168 = vst.msk [vmem:[#allocation6 + $0x6c] sm:$0xf0] %vm2144, %v2115
    %2169 = vst.msk [vmem:[#allocation6 + $0x74] sm:$0xff] %vm2146, %v2117
    %2170 = vst.msk [vmem:[#allocation6 + $0x7c] sm:$0xf] %vm2148, %v2119
    // Predicated region
    $region10: #{tpu_custom_call.1} parent=1 // pred_check
      _
    $region11: #{tpu_custom_call.1} parent=1 // pred_check_branch
      %2172 = sbr.rel (0) target = $region13
    $region12: #{tpu_custom_call.1} parent=1 // pred_region
      %s2174 = ssub.s32 2048, 2048
      %2175 = vsyncadd [#allocation5], %s2174
      %s2176 = sshll.u32 [#allocation6], 4
      %s2177 = int_to_ptr.vmem [resolvable:$true] %s2176
      %2182 = dma.vmem_to_hbm [thread:$0]  %s2177, 2048, %s1, [#allocation5], 128, 128, 8
    $region13: #{tpu_custom_call.1} parent=1 // pred_fallthru
      _
    // Predicated region
    $region14: #{tpu_custom_call.1} parent=1 // pred_check
      _
    $region15: #{tpu_custom_call.1} parent=1 // pred_check_branch
      %2184 = sbr.rel (0) target = $region17
    $region16: #{tpu_custom_call.1} parent=1 // pred_region
      %2185 = dma.done [#allocation5], 2048
    $region17: #{tpu_custom_call.1} parent=1 // pred_fallthru
      _
    %2186 = vsyncpa [#allocation4], 1
    %2187 = vsyncpa [#allocation5], 1

</llo_original>
